<compile_context>
chip_gen: v7x
topology: tpu7x:2x2x1
jax: 0.10.0
libtpu: 0.0.40
codegen_flags: <defaults>
</compile_context>

<pallas_src>
import functools

import jax
import jax.numpy as jnp
from jax import lax
from jax.experimental import pallas as pl
from jax.experimental.pallas import tpu as pltpu


# ----------------------- shared in-kernel im2col packing ----------------------- #

def _fill_im2col(xpp_ref, col_ref, *, ipb, ho, wo, cin):
    """Pack the 9 stride-2 conv taps of `ipb` images into (ipb*ho*wo, 9*cin).

    xpp_ref is the parity-split, zero-padded input:
      xpp[b, 2*(dy%2)+(dx%2), oy + dy//2, ox + dx//2, :] == xpad[b, 2*oy+dy, 2*ox+dx, :]
    so every tap is a unit-stride window; column block t*cin:(t+1)*cin of the
    packed tile holds tap t = dy*3+dx (matches the packed weight row layout).
    """
    for b in range(ipb):
        for dy in range(3):
            for dx in range(3):
                t = dy * 3 + dx
                par = 2 * (dy % 2) + (dx % 2)
                qy, qx = dy // 2, dx // 2
                xt = xpp_ref[b, par, qy:qy + ho, qx:qx + wo, :]
                col_ref[b * ho * wo:(b + 1) * ho * wo,
                        t * cin:(t + 1) * cin] = xt.reshape(ho * wo, cin)


# -------------------- kernel 1a: conv + BN batch statistics -------------------- #

def _conv_stats_kernel(xpp_ref, w_ref, conv_ref, sum_ref, ssq_ref, col_ref,
                       *, ipb, ho, wo, cin, cout):
    # xpp_ref : (ipb, 4, Ho+1, Wo+1, Cin) bf16
    # w_ref   : (9*Cin, Cout) bf16  (VMEM-resident, constant index_map)
    # conv_ref: (ipb*Ho*Wo, Cout) bf16
    # sum/ssq : (1, 1, Cout) f32    per-block BN partial statistics
    _fill_im2col(xpp_ref, col_ref, ipb=ipb, ho=ho, wo=wo, cin=cin)
    acc = jnp.dot(col_ref[...], w_ref[...], preferred_element_type=jnp.float32)
    conv_ref[...] = acc.astype(conv_ref.dtype)
    sum_ref[...] = jnp.sum(acc, axis=0).reshape(1, 1, cout)
    ssq_ref[...] = jnp.sum(acc * acc, axis=0).reshape(1, 1, cout)


# ------------------- kernel 1b: conv with BN folded (eval mode) ------------------- #

def _conv_eval_kernel(xpp_ref, w_ref, scale_ref, shift_ref, out_ref, col_ref,
                      *, ipb, ho, wo, cin):
    _fill_im2col(xpp_ref, col_ref, ipb=ipb, ho=ho, wo=wo, cin=cin)
    acc = jnp.dot(col_ref[...], w_ref[...], preferred_element_type=jnp.float32)
    out_ref[...] = (acc * scale_ref[...] + shift_ref[...]).astype(out_ref.dtype)


# --------------------- kernel 2: folded BN scale/shift (training) --------------------- #

def _affine_kernel(y_ref, scale_ref, shift_ref, o_ref):
    o_ref[...] = (y_ref[...].astype(jnp.float32) * scale_ref[...]
                  + shift_ref[...]).astype(o_ref.dtype)


# ----------------------------------- helpers ----------------------------------- #

def _choose_images_per_block(batch, rows_per_image, target_rows=256, max_rows=4096):
    """Pick how many images share a grid block so each MXU dot sees >= target
    rows (when batch allows) while keeping the packed tile VMEM-friendly."""
    divisors = [d for d in range(1, batch + 1) if batch % d == 0]
    ipb = next((d for d in divisors if d * rows_per_image >= target_rows), batch)
    fitting = [d for d in divisors if d * rows_per_image <= max_rows]
    if fitting and ipb * rows_per_image > max_rows:
        ipb = fitting[-1]
    return ipb


def _vmem_limit(ipb, ho, wo, cin, cout):
    m_blk = ipb * ho * wo
    in_blk = ipb * 4 * (ho + 1) * (wo + 1) * cin * 2       # bf16 input block
    out_blk = m_blk * cout * 2 + 2 * 1 * cout * 4           # bf16 conv + f32 stats
    w_res = 9 * cin * cout * 2                               # resident weights
    col = m_blk * 9 * cin * 2                                # im2col scratch
    acc = m_blk * cout * 4                                   # f32 accumulator
    est = 2 * (in_blk + out_blk) + w_res + col + acc + (2 << 20)
    # keep well under v7x's 64 MiB physical VMEM
    return int(min(max(est, 16 << 20), 48 << 20))


# --------------------------------- pallas_calls --------------------------------- #

def _conv_bn_stats(xpp, w_packed, ipb, ho, wo, cin, cout):
    batch = xpp.shape[0]
    nsteps = batch // ipb
    m_blk = ipb * ho * wo
    kernel = functools.partial(_conv_stats_kernel,
                               ipb=ipb, ho=ho, wo=wo, cin=cin, cout=cout)
    return pl.pallas_call(
        kernel,
        out_shape=(
            jax.ShapeDtypeStruct((batch * ho * wo, cout), jnp.bfloat16),
            jax.ShapeDtypeStruct((nsteps, 1, cout), jnp.float32),
            jax.ShapeDtypeStruct((nsteps, 1, cout), jnp.float32),
        ),
        grid=(nsteps,),
        in_specs=[
            pl.BlockSpec((ipb, 4, ho + 1, wo + 1, cin), lambda i: (i, 0, 0, 0, 0)),
            pl.BlockSpec((9 * cin, cout), lambda i: (0, 0)),   # weights stay resident
        ],
        out_specs=(
            pl.BlockSpec((m_blk, cout), lambda i: (i, 0)),
            pl.BlockSpec((1, 1, cout), lambda i: (i, 0, 0)),
            pl.BlockSpec((1, 1, cout), lambda i: (i, 0, 0)),
        ),
        scratch_shapes=[pltpu.VMEM((m_blk, 9 * cin), jnp.bfloat16)],
        compiler_params=pltpu.CompilerParams(
            dimension_semantics=("parallel",),
            vmem_limit_bytes=_vmem_limit(ipb, ho, wo, cin, cout)),
    )(xpp, w_packed)


def _conv_bn_eval(xpp, w_packed, scale_row, shift_row, ipb, ho, wo, cin, cout):
    batch = xpp.shape[0]
    nsteps = batch // ipb
    m_blk = ipb * ho * wo
    kernel = functools.partial(_conv_eval_kernel, ipb=ipb, ho=ho, wo=wo, cin=cin)
    return pl.pallas_call(
        kernel,
        out_shape=jax.ShapeDtypeStruct((batch * ho * wo, cout), jnp.float32),
        grid=(nsteps,),
        in_specs=[
            pl.BlockSpec((ipb, 4, ho + 1, wo + 1, cin), lambda i: (i, 0, 0, 0, 0)),
            pl.BlockSpec((9 * cin, cout), lambda i: (0, 0)),
            pl.BlockSpec((1, cout), lambda i: (0, 0)),
            pl.BlockSpec((1, cout), lambda i: (0, 0)),
        ],
        out_specs=pl.BlockSpec((m_blk, cout), lambda i: (i, 0)),
        scratch_shapes=[pltpu.VMEM((m_blk, 9 * cin), jnp.bfloat16)],
        compiler_params=pltpu.CompilerParams(
            dimension_semantics=("parallel",),
            vmem_limit_bytes=_vmem_limit(ipb, ho, wo, cin, cout)),
    )(xpp, w_packed, scale_row, shift_row)


def _apply_affine(y2d, scale_row, shift_row, tile_m=2048):
    n, cout = y2d.shape
    tm = min(n, tile_m)
    return pl.pallas_call(
        _affine_kernel,
        out_shape=jax.ShapeDtypeStruct((n, cout), jnp.float32),
        grid=(pl.cdiv(n, tm),),
        in_specs=[
            pl.BlockSpec((tm, cout), lambda i: (i, 0)),
            pl.BlockSpec((1, cout), lambda i: (0, 0)),
            pl.BlockSpec((1, cout), lambda i: (0, 0)),
        ],
        out_specs=pl.BlockSpec((tm, cout), lambda i: (i, 0)),
        compiler_params=pltpu.CompilerParams(dimension_semantics=("parallel",)),
    )(y2d, scale_row, shift_row)


# ----------------------------------- wrapper ----------------------------------- #

def patch_merging(x, weight, bias, gamma, beta,
                  running_mean=None, running_var=None, eps=1e-5):
    """PatchMerging forward: Conv2d(3x3, stride 2, pad 1) + BatchNorm2d.

    x:      (B, H, W, Cin) float32 (channel-last, as the module's input/output;
            the PyTorch NCHW permutes are layout no-ops here)
    weight: (Cout, Cin, 3, 3)   PyTorch Conv2d layout
    bias:   (Cout,)
    gamma/beta: (Cout,)         BatchNorm affine
    running_mean/var: if given -> eval-mode BN (folded into the conv kernel);
                      otherwise batch statistics (training-mode forward, the
                      default for a freshly constructed nn.Module).
    returns (B, H//2, W//2, Cout) float32
    """
    B, H, W, cin = x.shape
    cout = weight.shape[0]
    assert H % 2 == 0 and W % 2 == 0, "PatchMerging expects even spatial dims"
    ho, wo = H // 2, W // 2

    # zero-pad by 1 and split into (row, col) parities: space-to-depth for
    # stride 2, so every conv tap is a unit-stride window inside the kernel.
    xpad = jnp.pad(x, ((0, 0), (1, 1), (1, 1), (0, 0)))
    xpp = xpad.reshape(B, ho + 1, 2, wo + 1, 2, cin).transpose(0, 2, 4, 1, 3, 5)
    xpp = xpp.reshape(B, 4, ho + 1, wo + 1, cin).astype(jnp.bfloat16)

    # (Cout, Cin, 3, 3) -> (9*Cin, Cout); K index = (dy*3+dx)*Cin + ci,
    # matching the im2col column layout packed inside the kernel.
    w_packed = jnp.transpose(weight, (2, 3, 1, 0)).reshape(9 * cin, cout)
    w_packed = w_packed.astype(jnp.bfloat16)

    ipb = _choose_images_per_block(B, ho * wo)

    if running_mean is not None:
        # Eval-mode BN: fold conv bias + running stats + affine into one
        # per-channel scale/shift applied inside the conv kernel.
        scale = gamma * lax.rsqrt(running_var + eps)
        shift = beta + (bias - running_mean) * scale
        y = _conv_bn_eval(xpp, w_packed,
                          scale.reshape(1, cout).astype(jnp.float32),
                          shift.reshape(1, cout).astype(jnp.float32),
                          ipb, ho, wo, cin, cout)
        return y.reshape(B, ho, wo, cout)

    # Training-mode BN (batch statistics). The conv bias cancels exactly
    # through the mean subtraction, so it is never added; this also keeps the
    # channel means near zero so E[x^2]-E[x]^2 does not cancel badly in f32.
    conv, psum, pssq = _conv_bn_stats(xpp, w_packed, ipb, ho, wo, cin, cout)

    n_el = B * ho * wo
    mean = psum.sum(axis=0)[0] / n_el                       # (Cout,)
    var = pssq.sum(axis=0)[0] / n_el - mean * mean          # biased, like BN
    scale = gamma * lax.rsqrt(var + eps)
    shift = beta - mean * scale

    y = _apply_affine(conv, scale.reshape(1, cout), shift.reshape(1, cout))
    return y.reshape(B, ho, wo, cout)


# ------------------------------------ main ------------------------------------ #

if __name__ == "__main__":
    B, H, W = 2, 16, 16
    Cin, Cout = 64, 128      # Cout = 128 -> full 128-lane output tiles
    eps = 1e-5

    key = jax.random.PRNGKey(0)
    kx, kw, kb, kg, kbe, krm, krv = jax.random.split(key, 7)
    x = jax.random.normal(kx, (B, H, W, Cin), jnp.float32)
    weight = jax.random.normal(kw, (Cout, Cin, 3, 3), jnp.float32) * 0.05
    bias = jax.random.normal(kb, (Cout,), jnp.float32) * 0.1
    gamma = 1.0 + 0.1 * jax.random.normal(kg, (Cout,), jnp.float32)
    beta = 0.1 * jax.random.normal(kbe, (Cout,), jnp.float32)

    # ---- training-mode forward (BN batch stats; default for a fresh module) ----
    out = jax.jit(patch_merging)(x, weight, bias, gamma, beta)
    out = jax.block_until_ready(out)
    assert out.shape == (B, H // 2, W // 2, Cout), out.shape
    assert bool(jnp.all(jnp.isfinite(out)))

    # pure-JAX reference (same bf16 matmul inputs; the kernel additionally
    # stores the conv intermediate in bf16, hence the 3e-2 budget)
    x_bf = x.astype(jnp.bfloat16).astype(jnp.float32)
    w_hwio = jnp.transpose(weight, (2, 3, 1, 0)).astype(jnp.bfloat16).astype(jnp.float32)
    ref_conv = lax.conv_general_dilated(
        x_bf, w_hwio, window_strides=(2, 2), padding=((1, 1), (1, 1)),
        dimension_numbers=("NHWC", "HWIO", "NHWC")) + bias
    mean_ref = ref_conv.mean(axis=(0, 1, 2))
    var_ref = ref_conv.var(axis=(0, 1, 2))
    ref = (ref_conv - mean_ref) * lax.rsqrt(var_ref + eps) * gamma + beta
    err = float(jnp.max(jnp.abs(out - ref)))
    assert err < 3e-2, f"train-mode max abs err {err}"

    # ---- eval-mode forward (running stats folded into the conv kernel) ----
    running_mean = 0.05 * jax.random.normal(krm, (Cout,), jnp.float32)
    running_var = 1.0 + 0.1 * jnp.abs(jax.random.normal(krv, (Cout,), jnp.float32))
    out_e = jax.jit(patch_merging)(x, weight, bias, gamma, beta,
                                   running_mean, running_var)
    out_e = jax.block_until_ready(out_e)
    ref_e = (ref_conv - running_mean) * lax.rsqrt(running_var + eps) * gamma + beta
    err_e = float(jnp.max(jnp.abs(out_e - ref_e)))
    assert err_e < 2e-2, f"eval-mode max abs err {err_e}"

    print("KERNEL_OK")
</pallas_src>

<mosaic_0001>
module attributes {stable_mosaic.version = 11 : i64} {
  func.func @_conv_stats_kernel(%arg0: i32, %arg1: memref<2x4x9x9x64xbf16, #tpu.memory_space<vmem>>, %arg2: memref<576x128xbf16, #tpu.memory_space<vmem>>, %arg3: memref<128x128xbf16, #tpu.memory_space<vmem>>, %arg4: memref<1x1x128xf32, #tpu.memory_space<vmem>>, %arg5: memref<1x1x128xf32, #tpu.memory_space<vmem>>, %arg6: memref<128x576xbf16, #tpu.memory_space<vmem>>) attributes {dimension_semantics = [#tpu.dimension_semantics<parallel>], iteration_bounds = array<i64: 1>, scalar_prefetch = 0 : i64, scratch_operands = 1 : i64, tpu.core_type = #tpu.core_type<tc>, window_params = [{transform_indices = @transform_0, window_bounds = array<i64: 2, 4, 9, 9, 64>}, {pipeline_mode = #tpu.pipeline_mode<synchronous>, transform_indices = @transform_1, window_bounds = array<i64: 576, 128>}, {transform_indices = @transform_2, window_bounds = array<i64: 128, 128>}, {transform_indices = @transform_3, window_bounds = array<i64: 1, 1, 128>}, {transform_indices = @transform_4, window_bounds = array<i64: 1, 1, 128>}]} {
    %c0 = arith.constant 0 : index
    %c0_0 = arith.constant 0 : index
    %c0_1 = arith.constant 0 : index
    %c0_2 = arith.constant 0 : index
    %c0_3 = arith.constant 0 : index
    %0 = vector.load %arg1[%c0, %c0_0, %c0_1, %c0_2, %c0_3] : memref<2x4x9x9x64xbf16, #tpu.memory_space<vmem>>, vector<1x1x8x8x64xbf16>
    %1 = vector.shape_cast %0 : vector<1x1x8x8x64xbf16> to vector<8x8x64xbf16>
    %2 = vector.shape_cast %1 : vector<8x8x64xbf16> to vector<64x64xbf16>
    %c0_4 = arith.constant 0 : index
    %c0_5 = arith.constant 0 : index
    %3 = vector.load %arg6[%c0_4, %c0_5] : memref<128x576xbf16, #tpu.memory_space<vmem>>, vector<64x64xbf16>
    tpu.vector_store %arg6[%c0_4, %c0_5], %2 {strides = array<i32>} : memref<128x576xbf16, #tpu.memory_space<vmem>>, vector<64x64xbf16>,
    %c0_6 = arith.constant 0 : index
    %c1 = arith.constant 1 : index
    %c0_7 = arith.constant 0 : index
    %c0_8 = arith.constant 0 : index
    %c0_9 = arith.constant 0 : index
    %4 = vector.load %arg1[%c0_6, %c1, %c0_7, %c0_8, %c0_9] : memref<2x4x9x9x64xbf16, #tpu.memory_space<vmem>>, vector<1x1x8x8x64xbf16>
    %5 = vector.shape_cast %4 : vector<1x1x8x8x64xbf16> to vector<8x8x64xbf16>
    %6 = vector.shape_cast %5 : vector<8x8x64xbf16> to vector<64x64xbf16>
    %c0_10 = arith.constant 0 : index
    %c64 = arith.constant 64 : index
    %7 = vector.load %arg6[%c0_10, %c64] : memref<128x576xbf16, #tpu.memory_space<vmem>>, vector<64x64xbf16>
    tpu.vector_store %arg6[%c0_10, %c64], %6 {strides = array<i32>} : memref<128x576xbf16, #tpu.memory_space<vmem>>, vector<64x64xbf16>,
    %c0_11 = arith.constant 0 : index
    %c0_12 = arith.constant 0 : index
    %c0_13 = arith.constant 0 : index
    %c1_14 = arith.constant 1 : index
    %c0_15 = arith.constant 0 : index
    %8 = vector.load %arg1[%c0_11, %c0_12, %c0_13, %c1_14, %c0_15] : memref<2x4x9x9x64xbf16, #tpu.memory_space<vmem>>, vector<1x1x8x8x64xbf16>
    %9 = vector.shape_cast %8 : vector<1x1x8x8x64xbf16> to vector<8x8x64xbf16>
    %10 = vector.shape_cast %9 : vector<8x8x64xbf16> to vector<64x64xbf16>
    %c0_16 = arith.constant 0 : index
    %c128 = arith.constant 128 : index
    %11 = vector.load %arg6[%c0_16, %c128] : memref<128x576xbf16, #tpu.memory_space<vmem>>, vector<64x64xbf16>
    tpu.vector_store %arg6[%c0_16, %c128], %10 {strides = array<i32>} : memref<128x576xbf16, #tpu.memory_space<vmem>>, vector<64x64xbf16>,
    %c0_17 = arith.constant 0 : index
    %c2 = arith.constant 2 : index
    %c0_18 = arith.constant 0 : index
    %c0_19 = arith.constant 0 : index
    %c0_20 = arith.constant 0 : index
    %12 = vector.load %arg1[%c0_17, %c2, %c0_18, %c0_19, %c0_20] : memref<2x4x9x9x64xbf16, #tpu.memory_space<vmem>>, vector<1x1x8x8x64xbf16>
    %13 = vector.shape_cast %12 : vector<1x1x8x8x64xbf16> to vector<8x8x64xbf16>
    %14 = vector.shape_cast %13 : vector<8x8x64xbf16> to vector<64x64xbf16>
    %c0_21 = arith.constant 0 : index
    %c192 = arith.constant 192 : index
    %15 = vector.load %arg6[%c0_21, %c192] : memref<128x576xbf16, #tpu.memory_space<vmem>>, vector<64x64xbf16>
    tpu.vector_store %arg6[%c0_21, %c192], %14 {strides = array<i32>} : memref<128x576xbf16, #tpu.memory_space<vmem>>, vector<64x64xbf16>,
    %c0_22 = arith.constant 0 : index
    %c3 = arith.constant 3 : index
    %c0_23 = arith.constant 0 : index
    %c0_24 = arith.constant 0 : index
    %c0_25 = arith.constant 0 : index
    %16 = vector.load %arg1[%c0_22, %c3, %c0_23, %c0_24, %c0_25] : memref<2x4x9x9x64xbf16, #tpu.memory_space<vmem>>, vector<1x1x8x8x64xbf16>
    %17 = vector.shape_cast %16 : vector<1x1x8x8x64xbf16> to vector<8x8x64xbf16>
    %18 = vector.shape_cast %17 : vector<8x8x64xbf16> to vector<64x64xbf16>
    %c0_26 = arith.constant 0 : index
    %c256 = arith.constant 256 : index
    %19 = vector.load %arg6[%c0_26, %c256] : memref<128x576xbf16, #tpu.memory_space<vmem>>, vector<64x64xbf16>
    tpu.vector_store %arg6[%c0_26, %c256], %18 {strides = array<i32>} : memref<128x576xbf16, #tpu.memory_space<vmem>>, vector<64x64xbf16>,
    %c0_27 = arith.constant 0 : index
    %c2_28 = arith.constant 2 : index
    %c0_29 = arith.constant 0 : index
    %c1_30 = arith.constant 1 : index
    %c0_31 = arith.constant 0 : index
    %20 = vector.load %arg1[%c0_27, %c2_28, %c0_29, %c1_30, %c0_31] : memref<2x4x9x9x64xbf16, #tpu.memory_space<vmem>>, vector<1x1x8x8x64xbf16>
    %21 = vector.shape_cast %20 : vector<1x1x8x8x64xbf16> to vector<8x8x64xbf16>
    %22 = vector.shape_cast %21 : vector<8x8x64xbf16> to vector<64x64xbf16>
    %c0_32 = arith.constant 0 : index
    %c320 = arith.constant 320 : index
    %23 = vector.load %arg6[%c0_32, %c320] : memref<128x576xbf16, #tpu.memory_space<vmem>>, vector<64x64xbf16>
    tpu.vector_store %arg6[%c0_32, %c320], %22 {strides = array<i32>} : memref<128x576xbf16, #tpu.memory_space<vmem>>, vector<64x64xbf16>,
    %c0_33 = arith.constant 0 : index
    %c0_34 = arith.constant 0 : index
    %c1_35 = arith.constant 1 : index
    %c0_36 = arith.constant 0 : index
    %c0_37 = arith.constant 0 : index
    %24 = vector.load %arg1[%c0_33, %c0_34, %c1_35, %c0_36, %c0_37] : memref<2x4x9x9x64xbf16, #tpu.memory_space<vmem>>, vector<1x1x8x8x64xbf16>
    %25 = vector.shape_cast %24 : vector<1x1x8x8x64xbf16> to vector<8x8x64xbf16>
    %26 = vector.shape_cast %25 : vector<8x8x64xbf16> to vector<64x64xbf16>
    %c0_38 = arith.constant 0 : index
    %c384 = arith.constant 384 : index
    %27 = vector.load %arg6[%c0_38, %c384] : memref<128x576xbf16, #tpu.memory_space<vmem>>, vector<64x64xbf16>
    tpu.vector_store %arg6[%c0_38, %c384], %26 {strides = array<i32>} : memref<128x576xbf16, #tpu.memory_space<vmem>>, vector<64x64xbf16>,
    %c0_39 = arith.constant 0 : index
    %c1_40 = arith.constant 1 : index
    %c1_41 = arith.constant 1 : index
    %c0_42 = arith.constant 0 : index
    %c0_43 = arith.constant 0 : index
    %28 = vector.load %arg1[%c0_39, %c1_40, %c1_41, %c0_42, %c0_43] : memref<2x4x9x9x64xbf16, #tpu.memory_space<vmem>>, vector<1x1x8x8x64xbf16>
    %29 = vector.shape_cast %28 : vector<1x1x8x8x64xbf16> to vector<8x8x64xbf16>
    %30 = vector.shape_cast %29 : vector<8x8x64xbf16> to vector<64x64xbf16>
    %c0_44 = arith.constant 0 : index
    %c448 = arith.constant 448 : index
    %31 = vector.load %arg6[%c0_44, %c448] : memref<128x576xbf16, #tpu.memory_space<vmem>>, vector<64x64xbf16>
    tpu.vector_store %arg6[%c0_44, %c448], %30 {strides = array<i32>} : memref<128x576xbf16, #tpu.memory_space<vmem>>, vector<64x64xbf16>,
    %c0_45 = arith.constant 0 : index
    %c0_46 = arith.constant 0 : index
    %c1_47 = arith.constant 1 : index
    %c1_48 = arith.constant 1 : index
    %c0_49 = arith.constant 0 : index
    %32 = vector.load %arg1[%c0_45, %c0_46, %c1_47, %c1_48, %c0_49] : memref<2x4x9x9x64xbf16, #tpu.memory_space<vmem>>, vector<1x1x8x8x64xbf16>
    %33 = vector.shape_cast %32 : vector<1x1x8x8x64xbf16> to vector<8x8x64xbf16>
    %34 = vector.shape_cast %33 : vector<8x8x64xbf16> to vector<64x64xbf16>
    %c0_50 = arith.constant 0 : index
    %c512 = arith.constant 512 : index
    %35 = vector.load %arg6[%c0_50, %c512] : memref<128x576xbf16, #tpu.memory_space<vmem>>, vector<64x64xbf16>
    tpu.vector_store %arg6[%c0_50, %c512], %34 {strides = array<i32>} : memref<128x576xbf16, #tpu.memory_space<vmem>>, vector<64x64xbf16>,
    %c1_51 = arith.constant 1 : index
    %c0_52 = arith.constant 0 : index
    %c0_53 = arith.constant 0 : index
    %c0_54 = arith.constant 0 : index
    %c0_55 = arith.constant 0 : index
    %36 = vector.load %arg1[%c1_51, %c0_52, %c0_53, %c0_54, %c0_55] : memref<2x4x9x9x64xbf16, #tpu.memory_space<vmem>>, vector<1x1x8x8x64xbf16>
    %37 = vector.shape_cast %36 : vector<1x1x8x8x64xbf16> to vector<8x8x64xbf16>
    %38 = vector.shape_cast %37 : vector<8x8x64xbf16> to vector<64x64xbf16>
    %c64_56 = arith.constant 64 : index
    %c0_57 = arith.constant 0 : index
    %39 = vector.load %arg6[%c64_56, %c0_57] : memref<128x576xbf16, #tpu.memory_space<vmem>>, vector<64x64xbf16>
    tpu.vector_store %arg6[%c64_56, %c0_57], %38 {strides = array<i32>} : memref<128x576xbf16, #tpu.memory_space<vmem>>, vector<64x64xbf16>,
    %c1_58 = arith.constant 1 : index
    %c1_59 = arith.constant 1 : index
    %c0_60 = arith.constant 0 : index
    %c0_61 = arith.constant 0 : index
    %c0_62 = arith.constant 0 : index
    %40 = vector.load %arg1[%c1_58, %c1_59, %c0_60, %c0_61, %c0_62] : memref<2x4x9x9x64xbf16, #tpu.memory_space<vmem>>, vector<1x1x8x8x64xbf16>
    %41 = vector.shape_cast %40 : vector<1x1x8x8x64xbf16> to vector<8x8x64xbf16>
    %42 = vector.shape_cast %41 : vector<8x8x64xbf16> to vector<64x64xbf16>
    %c64_63 = arith.constant 64 : index
    %c64_64 = arith.constant 64 : index
    %43 = vector.load %arg6[%c64_63, %c64_64] : memref<128x576xbf16, #tpu.memory_space<vmem>>, vector<64x64xbf16>
    tpu.vector_store %arg6[%c64_63, %c64_64], %42 {strides = array<i32>} : memref<128x576xbf16, #tpu.memory_space<vmem>>, vector<64x64xbf16>,
    %c1_65 = arith.constant 1 : index
    %c0_66 = arith.constant 0 : index
    %c0_67 = arith.constant 0 : index
    %c1_68 = arith.constant 1 : index
    %c0_69 = arith.constant 0 : index
    %44 = vector.load %arg1[%c1_65, %c0_66, %c0_67, %c1_68, %c0_69] : memref<2x4x9x9x64xbf16, #tpu.memory_space<vmem>>, vector<1x1x8x8x64xbf16>
    %45 = vector.shape_cast %44 : vector<1x1x8x8x64xbf16> to vector<8x8x64xbf16>
    %46 = vector.shape_cast %45 : vector<8x8x64xbf16> to vector<64x64xbf16>
    %c64_70 = arith.constant 64 : index
    %c128_71 = arith.constant 128 : index
    %47 = vector.load %arg6[%c64_70, %c128_71] : memref<128x576xbf16, #tpu.memory_space<vmem>>, vector<64x64xbf16>
    tpu.vector_store %arg6[%c64_70, %c128_71], %46 {strides = array<i32>} : memref<128x576xbf16, #tpu.memory_space<vmem>>, vector<64x64xbf16>,
    %c1_72 = arith.constant 1 : index
    %c2_73 = arith.constant 2 : index
    %c0_74 = arith.constant 0 : index
    %c0_75 = arith.constant 0 : index
    %c0_76 = arith.constant 0 : index
    %48 = vector.load %arg1[%c1_72, %c2_73, %c0_74, %c0_75, %c0_76] : memref<2x4x9x9x64xbf16, #tpu.memory_space<vmem>>, vector<1x1x8x8x64xbf16>
    %49 = vector.shape_cast %48 : vector<1x1x8x8x64xbf16> to vector<8x8x64xbf16>
    %50 = vector.shape_cast %49 : vector<8x8x64xbf16> to vector<64x64xbf16>
    %c64_77 = arith.constant 64 : index
    %c192_78 = arith.constant 192 : index
    %51 = vector.load %arg6[%c64_77, %c192_78] : memref<128x576xbf16, #tpu.memory_space<vmem>>, vector<64x64xbf16>
    tpu.vector_store %arg6[%c64_77, %c192_78], %50 {strides = array<i32>} : memref<128x576xbf16, #tpu.memory_space<vmem>>, vector<64x64xbf16>,
    %c1_79 = arith.constant 1 : index
    %c3_80 = arith.constant 3 : index
    %c0_81 = arith.constant 0 : index
    %c0_82 = arith.constant 0 : index
    %c0_83 = arith.constant 0 : index
    %52 = vector.load %arg1[%c1_79, %c3_80, %c0_81, %c0_82, %c0_83] : memref<2x4x9x9x64xbf16, #tpu.memory_space<vmem>>, vector<1x1x8x8x64xbf16>
    %53 = vector.shape_cast %52 : vector<1x1x8x8x64xbf16> to vector<8x8x64xbf16>
    %54 = vector.shape_cast %53 : vector<8x8x64xbf16> to vector<64x64xbf16>
    %c64_84 = arith.constant 64 : index
    %c256_85 = arith.constant 256 : index
    %55 = vector.load %arg6[%c64_84, %c256_85] : memref<128x576xbf16, #tpu.memory_space<vmem>>, vector<64x64xbf16>
    tpu.vector_store %arg6[%c64_84, %c256_85], %54 {strides = array<i32>} : memref<128x576xbf16, #tpu.memory_space<vmem>>, vector<64x64xbf16>,
    %c1_86 = arith.constant 1 : index
    %c2_87 = arith.constant 2 : index
    %c0_88 = arith.constant 0 : index
    %c1_89 = arith.constant 1 : index
    %c0_90 = arith.constant 0 : index
    %56 = vector.load %arg1[%c1_86, %c2_87, %c0_88, %c1_89, %c0_90] : memref<2x4x9x9x64xbf16, #tpu.memory_space<vmem>>, vector<1x1x8x8x64xbf16>
    %57 = vector.shape_cast %56 : vector<1x1x8x8x64xbf16> to vector<8x8x64xbf16>
    %58 = vector.shape_cast %57 : vector<8x8x64xbf16> to vector<64x64xbf16>
    %c64_91 = arith.constant 64 : index
    %c320_92 = arith.constant 320 : index
    %59 = vector.load %arg6[%c64_91, %c320_92] : memref<128x576xbf16, #tpu.memory_space<vmem>>, vector<64x64xbf16>
    tpu.vector_store %arg6[%c64_91, %c320_92], %58 {strides = array<i32>} : memref<128x576xbf16, #tpu.memory_space<vmem>>, vector<64x64xbf16>,
    %c1_93 = arith.constant 1 : index
    %c0_94 = arith.constant 0 : index
    %c1_95 = arith.constant 1 : index
    %c0_96 = arith.constant 0 : index
    %c0_97 = arith.constant 0 : index
    %60 = vector.load %arg1[%c1_93, %c0_94, %c1_95, %c0_96, %c0_97] : memref<2x4x9x9x64xbf16, #tpu.memory_space<vmem>>, vector<1x1x8x8x64xbf16>
    %61 = vector.shape_cast %60 : vector<1x1x8x8x64xbf16> to vector<8x8x64xbf16>
    %62 = vector.shape_cast %61 : vector<8x8x64xbf16> to vector<64x64xbf16>
    %c64_98 = arith.constant 64 : index
    %c384_99 = arith.constant 384 : index
    %63 = vector.load %arg6[%c64_98, %c384_99] : memref<128x576xbf16, #tpu.memory_space<vmem>>, vector<64x64xbf16>
    tpu.vector_store %arg6[%c64_98, %c384_99], %62 {strides = array<i32>} : memref<128x576xbf16, #tpu.memory_space<vmem>>, vector<64x64xbf16>,
    %c1_100 = arith.constant 1 : index
    %c1_101 = arith.constant 1 : index
    %c1_102 = arith.constant 1 : index
    %c0_103 = arith.constant 0 : index
    %c0_104 = arith.constant 0 : index
    %64 = vector.load %arg1[%c1_100, %c1_101, %c1_102, %c0_103, %c0_104] : memref<2x4x9x9x64xbf16, #tpu.memory_space<vmem>>, vector<1x1x8x8x64xbf16>
    %65 = vector.shape_cast %64 : vector<1x1x8x8x64xbf16> to vector<8x8x64xbf16>
    %66 = vector.shape_cast %65 : vector<8x8x64xbf16> to vector<64x64xbf16>
    %c64_105 = arith.constant 64 : index
    %c448_106 = arith.constant 448 : index
    %67 = vector.load %arg6[%c64_105, %c448_106] : memref<128x576xbf16, #tpu.memory_space<vmem>>, vector<64x64xbf16>
    tpu.vector_store %arg6[%c64_105, %c448_106], %66 {strides = array<i32>} : memref<128x576xbf16, #tpu.memory_space<vmem>>, vector<64x64xbf16>,
    %c1_107 = arith.constant 1 : index
    %c0_108 = arith.constant 0 : index
    %c1_109 = arith.constant 1 : index
    %c1_110 = arith.constant 1 : index
    %c0_111 = arith.constant 0 : index
    %68 = vector.load %arg1[%c1_107, %c0_108, %c1_109, %c1_110, %c0_111] : memref<2x4x9x9x64xbf16, #tpu.memory_space<vmem>>, vector<1x1x8x8x64xbf16>
    %69 = vector.shape_cast %68 : vector<1x1x8x8x64xbf16> to vector<8x8x64xbf16>
    %70 = vector.shape_cast %69 : vector<8x8x64xbf16> to vector<64x64xbf16>
    %c64_112 = arith.constant 64 : index
    %c512_113 = arith.constant 512 : index
    %71 = vector.load %arg6[%c64_112, %c512_113] : memref<128x576xbf16, #tpu.memory_space<vmem>>, vector<64x64xbf16>
    tpu.vector_store %arg6[%c64_112, %c512_113], %70 {strides = array<i32>} : memref<128x576xbf16, #tpu.memory_space<vmem>>, vector<64x64xbf16>,
    %c0_114 = arith.constant 0 : index
    %c0_115 = arith.constant 0 : index
    %72 = vector.load %arg6[%c0_114, %c0_115] : memref<128x576xbf16, #tpu.memory_space<vmem>>, vector<128x576xbf16>
    %c0_116 = arith.constant 0 : index
    %c0_117 = arith.constant 0 : index
    %73 = vector.load %arg2[%c0_116, %c0_117] : memref<576x128xbf16, #tpu.memory_space<vmem>>, vector<576x128xbf16>
    %cst = arith.constant dense<0.000000e+00> : vector<128x128xf32>
    %74 = tpu.matmul %72, %73, %cst {dimension_numbers = #tpu.dot_dimension_numbers<[1], [0], [0], [1], [0, 0, 1, 1], [], []>} : vector<128x576xbf16>, vector<576x128xbf16>, vector<128x128xf32> -> vector<128x128xf32>
    %75 = arith.truncf %74 : vector<128x128xf32> to vector<128x128xbf16>
    %c0_118 = arith.constant 0 : index
    %c0_119 = arith.constant 0 : index
    %76 = vector.load %arg3[%c0_118, %c0_119] : memref<128x128xbf16, #tpu.memory_space<vmem>>, vector<128x128xbf16>
    tpu.vector_store %arg3[%c0_118, %c0_119], %75 {strides = array<i32>} : memref<128x128xbf16, #tpu.memory_space<vmem>>, vector<128x128xbf16>,
    %cst_120 = arith.constant dense<0.000000e+00> : vector<128xf32>
    %77 = vector.multi_reduction <add>, %74, %cst_120 [0] : vector<128x128xf32> to vector<128xf32>
    %78 = vector.shape_cast %77 : vector<128xf32> to vector<1x1x128xf32>
    %c0_121 = arith.constant 0 : index
    %c0_122 = arith.constant 0 : index
    %c0_123 = arith.constant 0 : index
    %79 = vector.load %arg4[%c0_121, %c0_122, %c0_123] : memref<1x1x128xf32, #tpu.memory_space<vmem>>, vector<1x1x128xf32>
    tpu.vector_store %arg4[%c0_121, %c0_122, %c0_123], %78 {strides = array<i32>} : memref<1x1x128xf32, #tpu.memory_space<vmem>>, vector<1x1x128xf32>,
    %80 = arith.mulf %74, %74 : vector<128x128xf32>
    %cst_124 = arith.constant dense<0.000000e+00> : vector<128xf32>
    %81 = vector.multi_reduction <add>, %80, %cst_124 [0] : vector<128x128xf32> to vector<128xf32>
    %82 = vector.shape_cast %81 : vector<128xf32> to vector<1x1x128xf32>
    %c0_125 = arith.constant 0 : index
    %c0_126 = arith.constant 0 : index
    %c0_127 = arith.constant 0 : index
    %83 = vector.load %arg5[%c0_125, %c0_126, %c0_127] : memref<1x1x128xf32, #tpu.memory_space<vmem>>, vector<1x1x128xf32>
    tpu.vector_store %arg5[%c0_125, %c0_126, %c0_127], %82 {strides = array<i32>} : memref<1x1x128xf32, #tpu.memory_space<vmem>>, vector<1x1x128xf32>,
    return
  }
  func.func @transform_0(%arg0: i32) -> (i32, i32, i32, i32, i32) {
    %c0_i32 = arith.constant 0 : i32
    %c0_i32_0 = arith.constant 0 : i32
    %c0_i32_1 = arith.constant 0 : i32
    %c0_i32_2 = arith.constant 0 : i32
    %c0_i32_3 = arith.constant 0 : i32
    return %arg0, %c0_i32, %c0_i32_0, %c0_i32_1, %c0_i32_2 : i32, i32, i32, i32, i32
  }
  func.func @transform_1(%arg0: i32) -> (i32, i32) {
    %c0_i32 = arith.constant 0 : i32
    %c0_i32_0 = arith.constant 0 : i32
    %c0_i32_1 = arith.constant 0 : i32
    return %c0_i32, %c0_i32_0 : i32, i32
  }
  func.func @transform_2(%arg0: i32) -> (i32, i32) {
    %c0_i32 = arith.constant 0 : i32
    %c0_i32_0 = arith.constant 0 : i32
    return %arg0, %c0_i32 : i32, i32
  }
  func.func @transform_3(%arg0: i32) -> (i32, i32, i32) {
    %c0_i32 = arith.constant 0 : i32
    %c0_i32_0 = arith.constant 0 : i32
    %c0_i32_1 = arith.constant 0 : i32
    return %arg0, %c0_i32, %c0_i32_0 : i32, i32, i32
  }
  func.func @transform_4(%arg0: i32) -> (i32, i32, i32) {
    %c0_i32 = arith.constant 0 : i32
    %c0_i32_0 = arith.constant 0 : i32
    %c0_i32_1 = arith.constant 0 : i32
    return %arg0, %c0_i32, %c0_i32_0 : i32, i32, i32
  }
}

module attributes {stable_mosaic.version = 11 : i64} {
  func.func @_affine_kernel(%arg0: i32, %arg1: memref<128x128xbf16, #tpu.memory_space<vmem>>, %arg2: memref<1x128xf32, #tpu.memory_space<vmem>>, %arg3: memref<1x128xf32, #tpu.memory_space<vmem>>, %arg4: memref<128x128xf32, #tpu.memory_space<vmem>>) attributes {dimension_semantics = [#tpu.dimension_semantics<parallel>], iteration_bounds = array<i64: 1>, scalar_prefetch = 0 : i64, scratch_operands = 0 : i64, tpu.core_type = #tpu.core_type<tc>, window_params = [{transform_indices = @transform_0, window_bounds = array<i64: 128, 128>}, {pipeline_mode = #tpu.pipeline_mode<synchronous>, transform_indices = @transform_1, window_bounds = array<i64: 1, 128>}, {pipeline_mode = #tpu.pipeline_mode<synchronous>, transform_indices = @transform_2, window_bounds = array<i64: 1, 128>}, {transform_indices = @transform_3, window_bounds = array<i64: 128, 128>}]} {
    %c0 = arith.constant 0 : index
    %c0_0 = arith.constant 0 : index
    %0 = vector.load %arg1[%c0, %c0_0] : memref<128x128xbf16, #tpu.memory_space<vmem>>, vector<128x128xbf16>
    %1 = arith.extf %0 : vector<128x128xbf16> to vector<128x128xf32>
    %c0_1 = arith.constant 0 : index
    %c0_2 = arith.constant 0 : index
    %2 = vector.load %arg2[%c0_1, %c0_2] : memref<1x128xf32, #tpu.memory_space<vmem>>, vector<1x128xf32>
    %3 = vector.broadcast %2 : vector<1x128xf32> to vector<128x128xf32>
    %4 = arith.mulf %1, %3 : vector<128x128xf32>
    %c0_3 = arith.constant 0 : index
    %c0_4 = arith.constant 0 : index
    %5 = vector.load %arg3[%c0_3, %c0_4] : memref<1x128xf32, #tpu.memory_space<vmem>>, vector<1x128xf32>
    %6 = vector.broadcast %5 : vector<1x128xf32> to vector<128x128xf32>
    %7 = arith.addf %4, %6 : vector<128x128xf32>
    %c0_5 = arith.constant 0 : index
    %c0_6 = arith.constant 0 : index
    %8 = vector.load %arg4[%c0_5, %c0_6] : memref<128x128xf32, #tpu.memory_space<vmem>>, vector<128x128xf32>
    tpu.vector_store %arg4[%c0_5, %c0_6], %7 {strides = array<i32>} : memref<128x128xf32, #tpu.memory_space<vmem>>, vector<128x128xf32>,
    return
  }
  func.func @transform_0(%arg0: i32) -> (i32, i32) {
    %c0_i32 = arith.constant 0 : i32
    %c0_i32_0 = arith.constant 0 : i32
    return %arg0, %c0_i32 : i32, i32
  }
  func.func @transform_1(%arg0: i32) -> (i32, i32) {
    %c0_i32 = arith.constant 0 : i32
    %c0_i32_0 = arith.constant 0 : i32
    %c0_i32_1 = arith.constant 0 : i32
    return %c0_i32, %c0_i32_0 : i32, i32
  }
  func.func @transform_2(%arg0: i32) -> (i32, i32) {
    %c0_i32 = arith.constant 0 : i32
    %c0_i32_0 = arith.constant 0 : i32
    %c0_i32_1 = arith.constant 0 : i32
    return %c0_i32, %c0_i32_0 : i32, i32
  }
  func.func @transform_3(%arg0: i32) -> (i32, i32) {
    %c0_i32 = arith.constant 0 : i32
    %c0_i32_0 = arith.constant 0 : i32
    return %arg0, %c0_i32 : i32, i32
  }
}

</mosaic_0001>

<llo_original>
// kernel: patch_merging.3
$region0: #{patch_merging.3}
  #allocation0 [shape = 'u32[]', space=smem, size = 0x4, offset = 0x4, fixed_abs, tag = 'smem constant byte address 0x4 - core index']
  #allocation1 [shape = 'u32[144,128]{1,0:T(1,128)}', space=vmem, size = 0x12000, scoped, tag = 'internal scratch']
  %s0 = inlined_call_operand.vmem [shape: bf16[128,128], index: 0, kind: input, shape index: {}]
  %s1 = inlined_call_operand.vmem [shape: f32[1,128], index: 1, kind: input, shape index: {}]
  %s2 = inlined_call_operand.vmem [shape: f32[1,128], index: 2, kind: input, shape index: {}]
  %s3 = inlined_call_operand.hbm [shape: f32[128,128], index: 3, kind: output, shape index: {}]
  %s4 = sld [smem:[#allocation0]]
  $region22: #{patch_merging.3} parent=0
    _
  %s6 = ssub.s32 1, %s4
  %s7 = scalar_select 0, %s6, %s4
  $region1: #{patch_merging.3} parent=0
    #allocation2 [shape = 'u8[65536]{0}', space=vmem, size = 0x10000, scoped, tag = 'output window, operand 0, single buffered']
    #allocation3 [shape = 's32[1]{0}', space=sflag, size = 0x4, scoped, tag = 'scoped memory for patch_merging.3']
    %8 = vsyncpa [#allocation3], 0
    // Predicated region
    $region2: #{patch_merging.3} parent=1 // pred_check
      _
    $region3: #{patch_merging.3} parent=1 // pred_check_branch
      %10 = sbr.rel (0) target = $region5
    $region4: #{patch_merging.3} parent=1 // pred_region
      _
    $region5: #{patch_merging.3} parent=1 // pred_fallthru
      _
    // Predicated region
    $region6: #{patch_merging.3} parent=1 // pred_check
      _
    $region7: #{patch_merging.3} parent=1 // pred_check_branch
      %12 = sbr.rel (0) target = $region9
    $region8: #{patch_merging.3} parent=1 // pred_region
      _
    $region9: #{patch_merging.3} parent=1 // pred_fallthru
      _
    // Predicated region
    $region10: #{patch_merging.3} parent=1 // pred_check
      _
    $region11: #{patch_merging.3} parent=1 // pred_check_branch
      %14 = sbr.rel (0) target = $region13
    $region12: #{patch_merging.3} parent=1 // pred_region
      _
    $region13: #{patch_merging.3} parent=1 // pred_fallthru
      _
    %v15 = vld [vmem:[%s0] sm:$0xf]
    %v16 = vld [vmem:[%s0 + $0x4] sm:$0xf]
    %v17 = vld [vmem:[%s0 + $0x8] sm:$0xf]
    %v18 = vld [vmem:[%s0 + $0xc] sm:$0xf]
    %v19 = vld [vmem:[%s0 + $0x10] sm:$0xf]
    %v20 = vld [vmem:[%s0 + $0x14] sm:$0xf]
    %v21 = vld [vmem:[%s0 + $0x18] sm:$0xf]
    %v22 = vld [vmem:[%s0 + $0x1c] sm:$0xf]
    %v23 = vld [vmem:[%s0 + $0x20] sm:$0xf]
    %v24 = vld [vmem:[%s0 + $0x24] sm:$0xf]
    %v25 = vld [vmem:[%s0 + $0x28] sm:$0xf]
    %v26 = vld [vmem:[%s0 + $0x2c] sm:$0xf]
    %v27 = vld [vmem:[%s0 + $0x30] sm:$0xf]
    %v28 = vld [vmem:[%s0 + $0x34] sm:$0xf]
    %v29 = vld [vmem:[%s0 + $0x38] sm:$0xf]
    %v30 = vld [vmem:[%s0 + $0x3c] sm:$0xf]
    %v31 = vunpack.c.l.bf16 %v15
    %v32 = vunpack.c.l.bf16 %v16
    %v33 = vunpack.c.l.bf16 %v17
    %v34 = vunpack.c.l.bf16 %v18
    %v35 = vunpack.c.l.bf16 %v19
    %v36 = vunpack.c.l.bf16 %v20
    %v37 = vunpack.c.l.bf16 %v21
    %v38 = vunpack.c.l.bf16 %v22
    %v39 = vunpack.c.l.bf16 %v23
    %v40 = vunpack.c.l.bf16 %v24
    %v41 = vunpack.c.l.bf16 %v25
    %v42 = vunpack.c.l.bf16 %v26
    %v43 = vunpack.c.l.bf16 %v27
    %v44 = vunpack.c.l.bf16 %v28
    %v45 = vunpack.c.l.bf16 %v29
    %v46 = vunpack.c.l.bf16 %v30
    %v47 = vld [vmem:[%s1] sm:$0x1]
    %v49 = vlaneseq
    %v50 = vshrl.u32 %v49, 7
    %v51 = vsub.s32 0, %v50
    %v52 = vrot.slane %v47, %v51
    %v54 = vmul.f32 %v31, %v52
    %v55 = vmul.f32 %v32, %v52
    %v56 = vmul.f32 %v33, %v52
    %v57 = vmul.f32 %v34, %v52
    %v58 = vmul.f32 %v35, %v52
    %v59 = vmul.f32 %v36, %v52
    %v60 = vmul.f32 %v37, %v52
    %v61 = vmul.f32 %v38, %v52
    %v62 = vmul.f32 %v39, %v52
    %v63 = vmul.f32 %v40, %v52
    %v64 = vmul.f32 %v41, %v52
    %v65 = vmul.f32 %v42, %v52
    %v66 = vmul.f32 %v43, %v52
    %v67 = vmul.f32 %v44, %v52
    %v68 = vmul.f32 %v45, %v52
    %v69 = vmul.f32 %v46, %v52
    %v70 = vld [vmem:[%s2] sm:$0x1]
    %v72 = vlaneseq
    %v73 = vshrl.u32 %v72, 7
    %v74 = vsub.s32 0, %v73
    %v75 = vrot.slane %v70, %v74
    %v77 = vadd.f32 %v54, %v75
    %v78 = vadd.f32 %v55, %v75
    %v79 = vadd.f32 %v56, %v75
    %v80 = vadd.f32 %v57, %v75
    %v81 = vadd.f32 %v58, %v75
    %v82 = vadd.f32 %v59, %v75
    %v83 = vadd.f32 %v60, %v75
    %v84 = vadd.f32 %v61, %v75
    %v85 = vadd.f32 %v62, %v75
    %v86 = vadd.f32 %v63, %v75
    %v87 = vadd.f32 %v64, %v75
    %v88 = vadd.f32 %v65, %v75
    %v89 = vadd.f32 %v66, %v75
    %v90 = vadd.f32 %v67, %v75
    %v91 = vadd.f32 %v68, %v75
    %v92 = vadd.f32 %v69, %v75
    %93 = vst [vmem:[#allocation2] sm:$0xff] %v77
    %94 = vst [vmem:[#allocation2 + $0x8] sm:$0xff] %v78
    %95 = vst [vmem:[#allocation2 + $0x10] sm:$0xff] %v79
    %96 = vst [vmem:[#allocation2 + $0x18] sm:$0xff] %v80
    %97 = vst [vmem:[#allocation2 + $0x20] sm:$0xff] %v81
    %98 = vst [vmem:[#allocation2 + $0x28] sm:$0xff] %v82
    %99 = vst [vmem:[#allocation2 + $0x30] sm:$0xff] %v83
    %100 = vst [vmem:[#allocation2 + $0x38] sm:$0xff] %v84
    %101 = vst [vmem:[#allocation2 + $0x40] sm:$0xff] %v85
    %102 = vst [vmem:[#allocation2 + $0x48] sm:$0xff] %v86
    %103 = vst [vmem:[#allocation2 + $0x50] sm:$0xff] %v87
    %104 = vst [vmem:[#allocation2 + $0x58] sm:$0xff] %v88
    %105 = vst [vmem:[#allocation2 + $0x60] sm:$0xff] %v89
    %106 = vst [vmem:[#allocation2 + $0x68] sm:$0xff] %v90
    %107 = vst [vmem:[#allocation2 + $0x70] sm:$0xff] %v91
    %108 = vst [vmem:[#allocation2 + $0x78] sm:$0xff] %v92
    // Predicated region
    $region14: #{patch_merging.3} parent=1 // pred_check
      _
    $region15: #{patch_merging.3} parent=1 // pred_check_branch
      %110 = sbr.rel (0) target = $region17
    $region16: #{patch_merging.3} parent=1 // pred_region
      %s112 = ssub.s32 2048, 2048
      %113 = vsyncadd [#allocation3], %s112
      %s114 = sshll.u32 [#allocation2], 4
      %s115 = int_to_ptr.vmem [resolvable:$true] %s114
      %120 = dma.vmem_to_hbm [thread:$0]  %s115, 2048, %s3, [#allocation3], 128, 128, 8
    $region17: #{patch_merging.3} parent=1 // pred_fallthru
      _
    // Predicated region
    $region18: #{patch_merging.3} parent=1 // pred_check
      _
    $region19: #{patch_merging.3} parent=1 // pred_check_branch
      %122 = sbr.rel (0) target = $region21
    $region20: #{patch_merging.3} parent=1 // pred_region
      %123 = dma.done [#allocation3], 2048
    $region21: #{patch_merging.3} parent=1 // pred_fallthru
      _
    %124 = vsyncpa [#allocation3], 1

// kernel: patch_merging.2
$region0: #{patch_merging.2}
  #allocation0 [shape = 'u32[]', space=smem, size = 0x4, offset = 0x4, fixed_abs, tag = 'smem constant byte address 0x4 - core index']
  #allocation1 [shape = 'u32[144,128]{1,0:T(1,128)}', space=vmem, size = 0x12000, scoped, tag = 'internal scratch']
  #allocation2 [shape = 'bf16[128,576]{1,0:T(16,128)(2,1)}', space=vmem, size = 0x28000, scoped, tag = 'scratch operand']
  %s0 = inlined_call_operand.vmem [shape: bf16[2,4,9,9,64], index: 0, kind: input, shape index: {}]
  %s1 = inlined_call_operand.vmem [shape: bf16[576,128], index: 1, kind: input, shape index: {}]
  %s2 = inlined_call_operand.vmem [shape: bf16[128,128], index: 2, kind: output, shape index: {0}]
  %s3 = inlined_call_operand.vmem [shape: f32[1,1,128], index: 3, kind: output, shape index: {1}]
  %s4 = inlined_call_operand.vmem [shape: f32[1,1,128], index: 4, kind: output, shape index: {2}]
  %5 = xla_tuple %s2, %s3, %s4
  %s6 = sld [smem:[#allocation0]]
  $region34: #{patch_merging.2} parent=0
    _
  %s8 = ssub.s32 1, %s6
  %s9 = scalar_select 0, %s8, %s6
  // Predicated region
  $region2: #{patch_merging.2} parent=0 // pred_check
    _
  $region3: #{patch_merging.2} parent=0 // pred_check_branch
    %11 = sbr.rel (0) target = $region5
  $region4: #{patch_merging.2} parent=0 // pred_region
    _
  $region5: #{patch_merging.2} parent=0 // pred_fallthru
    _
  // Predicated region
  $region6: #{patch_merging.2} parent=0 // pred_check
    _
  $region7: #{patch_merging.2} parent=0 // pred_check_branch
    %13 = sbr.rel (0) target = $region9
  $region8: #{patch_merging.2} parent=0 // pred_region
    _
  $region9: #{patch_merging.2} parent=0 // pred_fallthru
    _
  %v15 = vld [vmem:[%s0] sm:$0xf]
  %v16 = vld [vmem:[%s0 + $0x8] sm:$0xf]
  %v17 = vld [vmem:[%s0 + $0x10] sm:$0xf]
  %v18 = vld [vmem:[%s0 + $0x18] sm:$0xf]
  %v19 = vld [vmem:[%s0 + $0x20] sm:$0xf]
  %v20 = vld [vmem:[%s0 + $0x28] sm:$0xf]
  %v21 = vld [vmem:[%s0 + $0x30] sm:$0xf]
  %v22 = vld [vmem:[%s0 + $0x38] sm:$0xf]
  %v31 = vunpack.c.l.b16 %v15
  %v32 = vunpack.c.l.b16 %v16
  %v33 = vunpack.c.l.b16 %v17
  %v34 = vunpack.c.l.b16 %v18
  %v35 = vunpack.c.l.b16 %v19
  %v36 = vunpack.c.l.b16 %v20
  %v37 = vunpack.c.l.b16 %v21
  %v38 = vunpack.c.l.b16 %v22
  %v39 = vpack.c.b16 %v32, %v31
  %v40 = vpack.c.b16 %v34, %v33
  %v41 = vpack.c.b16 %v36, %v35
  %v42 = vpack.c.b16 %v38, %v37
  %vm47 = vcmask 523264
  %48 = vst.msk [vmem:[#allocation2] sm:$0xff] %vm47, %v39
  %49 = vst.msk [vmem:[#allocation2 + $0x28] sm:$0xff] %vm47, %v40
  %50 = vst.msk [vmem:[#allocation2 + $0x50] sm:$0xff] %vm47, %v41
  %51 = vst.msk [vmem:[#allocation2 + $0x78] sm:$0xff] %vm47, %v42
  %s52 = scalar_lea.vmem %s0, 72
  %v53 = vld [vmem:[%s52] sm:$0xf]
  %v54 = vld [vmem:[%s52 + $0x8] sm:$0xf]
  %v55 = vld [vmem:[%s52 + $0x10] sm:$0xf]
  %v56 = vld [vmem:[%s52 + $0x18] sm:$0xf]
  %v57 = vld [vmem:[%s52 + $0x20] sm:$0xf]
  %v58 = vld [vmem:[%s52 + $0x28] sm:$0xf]
  %v59 = vld [vmem:[%s52 + $0x30] sm:$0xf]
  %v60 = vld [vmem:[%s52 + $0x38] sm:$0xf]
  %v69 = vunpack.c.l.b16 %v53
  %v70 = vunpack.c.l.b16 %v54
  %v71 = vunpack.c.l.b16 %v55
  %v72 = vunpack.c.l.b16 %v56
  %v73 = vunpack.c.l.b16 %v57
  %v74 = vunpack.c.l.b16 %v58
  %v75 = vunpack.c.l.b16 %v59
  %v76 = vunpack.c.l.b16 %v60
  %v77 = vpack.c.b16 %v70, %v69
  %v78 = vpack.c.b16 %v72, %v71
  %v79 = vpack.c.b16 %v74, %v73
  %v80 = vpack.c.b16 %v76, %v75
  %81 = vrot.lane.b32.xlu0 %v77, 64
  %v82 = vpop.permute.xlu0 %81
  %83 = vrot.lane.b32.xlu0 %v78, 64
  %v84 = vpop.permute.xlu0 %83
  %85 = vrot.lane.b32.xlu0 %v79, 64
  %v86 = vpop.permute.xlu0 %85
  %87 = vrot.lane.b32.xlu0 %v80, 64
  %v88 = vpop.permute.xlu0 %87
  %vm93 = vcmask 1048064
  %94 = vst.msk [vmem:[#allocation2] sm:$0xff] %vm93, %v82
  %95 = vst.msk [vmem:[#allocation2 + $0x28] sm:$0xff] %vm93, %v84
  %96 = vst.msk [vmem:[#allocation2 + $0x50] sm:$0xff] %vm93, %v86
  %97 = vst.msk [vmem:[#allocation2 + $0x78] sm:$0xff] %vm93, %v88
  %v98 = vld [vmem:[%s0] sm:$0xf]
  %v99 = vld [vmem:[%s0 + $0x4] sm:$0x1]
  %v100 = vld [vmem:[%s0 + $0x8] sm:$0xf]
  %v101 = vld [vmem:[%s0 + $0xc] sm:$0x1]
  %v102 = vld [vmem:[%s0 + $0x10] sm:$0xf]
  %v103 = vld [vmem:[%s0 + $0x14] sm:$0x1]
  %v104 = vld [vmem:[%s0 + $0x18] sm:$0xf]
  %v105 = vld [vmem:[%s0 + $0x1c] sm:$0x1]
  %v106 = vld [vmem:[%s0 + $0x20] sm:$0xf]
  %v107 = vld [vmem:[%s0 + $0x24] sm:$0x1]
  %v108 = vld [vmem:[%s0 + $0x28] sm:$0xf]
  %v109 = vld [vmem:[%s0 + $0x2c] sm:$0x1]
  %v110 = vld [vmem:[%s0 + $0x30] sm:$0xf]
  %v111 = vld [vmem:[%s0 + $0x34] sm:$0x1]
  %v112 = vld [vmem:[%s0 + $0x38] sm:$0xf]
  %v113 = vld [vmem:[%s0 + $0x3c] sm:$0x1]
  %vm114 = vsmask.f32 3328
  %vm115 = vsmask.f32 7440
  %vm116 = vmor %vm114, %vm115
  %v118 = vshrl.u32 %v98, 16
  %v120 = vrot.slane %v118, 4
  %v121 = vshll.u32 %v98, 16
  %v123 = vrot.slane %v121, 5
  %v124 = vor.u32 %v120, %v123
  %v125 = vrot.slane %v124, 4
  %v127 = vshll.u32 %v99, 16
  %v129 = vrot.slane %v127, 5
  %v130 = vsel %vm116, %v125, %v129
  %v132 = vshrl.u32 %v100, 16
  %v134 = vrot.slane %v132, 4
  %v135 = vshll.u32 %v100, 16
  %v137 = vrot.slane %v135, 5
  %v138 = vor.u32 %v134, %v137
  %v139 = vrot.slane %v138, 4
  %v141 = vshll.u32 %v101, 16
  %v143 = vrot.slane %v141, 5
  %v144 = vsel %vm116, %v139, %v143
  %v146 = vshrl.u32 %v102, 16
  %v148 = vrot.slane %v146, 4
  %v149 = vshll.u32 %v102, 16
  %v151 = vrot.slane %v149, 5
  %v152 = vor.u32 %v148, %v151
  %v153 = vrot.slane %v152, 4
  %v155 = vshll.u32 %v103, 16
  %v157 = vrot.slane %v155, 5
  %v158 = vsel %vm116, %v153, %v157
  %v160 = vshrl.u32 %v104, 16
  %v162 = vrot.slane %v160, 4
  %v163 = vshll.u32 %v104, 16
  %v165 = vrot.slane %v163, 5
  %v166 = vor.u32 %v162, %v165
  %v167 = vrot.slane %v166, 4
  %v169 = vshll.u32 %v105, 16
  %v171 = vrot.slane %v169, 5
  %v172 = vsel %vm116, %v167, %v171
  %v174 = vshrl.u32 %v106, 16
  %v176 = vrot.slane %v174, 4
  %v177 = vshll.u32 %v106, 16
  %v179 = vrot.slane %v177, 5
  %v180 = vor.u32 %v176, %v179
  %v181 = vrot.slane %v180, 4
  %v183 = vshll.u32 %v107, 16
  %v185 = vrot.slane %v183, 5
  %v186 = vsel %vm116, %v181, %v185
  %v188 = vshrl.u32 %v108, 16
  %v190 = vrot.slane %v188, 4
  %v191 = vshll.u32 %v108, 16
  %v193 = vrot.slane %v191, 5
  %v194 = vor.u32 %v190, %v193
  %v195 = vrot.slane %v194, 4
  %v197 = vshll.u32 %v109, 16
  %v199 = vrot.slane %v197, 5
  %v200 = vsel %vm116, %v195, %v199
  %v202 = vshrl.u32 %v110, 16
  %v204 = vrot.slane %v202, 4
  %v205 = vshll.u32 %v110, 16
  %v207 = vrot.slane %v205, 5
  %v208 = vor.u32 %v204, %v207
  %v209 = vrot.slane %v208, 4
  %v211 = vshll.u32 %v111, 16
  %v213 = vrot.slane %v211, 5
  %v214 = vsel %vm116, %v209, %v213
  %v216 = vshrl.u32 %v112, 16
  %v218 = vrot.slane %v216, 4
  %v219 = vshll.u32 %v112, 16
  %v221 = vrot.slane %v219, 5
  %v222 = vor.u32 %v218, %v221
  %v223 = vrot.slane %v222, 4
  %v225 = vshll.u32 %v113, 16
  %v227 = vrot.slane %v225, 5
  %v228 = vsel %vm116, %v223, %v227
  %v229 = vunpack.c.l.b16 %v130
  %v230 = vunpack.c.l.b16 %v144
  %v231 = vunpack.c.l.b16 %v158
  %v232 = vunpack.c.l.b16 %v172
  %v233 = vunpack.c.l.b16 %v186
  %v234 = vunpack.c.l.b16 %v200
  %v235 = vunpack.c.l.b16 %v214
  %v236 = vunpack.c.l.b16 %v228
  %v237 = vpack.c.b16 %v230, %v229
  %v238 = vpack.c.b16 %v232, %v231
  %v239 = vpack.c.b16 %v234, %v233
  %v240 = vpack.c.b16 %v236, %v235
  %245 = vst.msk [vmem:[#allocation2 + $0x8] sm:$0xff] %vm47, %v237
  %246 = vst.msk [vmem:[#allocation2 + $0x30] sm:$0xff] %vm47, %v238
  %247 = vst.msk [vmem:[#allocation2 + $0x58] sm:$0xff] %vm47, %v239
  %248 = vst.msk [vmem:[#allocation2 + $0x80] sm:$0xff] %vm47, %v240
  %s249 = scalar_lea.vmem %s0, 144
  %v250 = vld [vmem:[%s249] sm:$0xf]
  %v251 = vld [vmem:[%s249 + $0x8] sm:$0xf]
  %v252 = vld [vmem:[%s249 + $0x10] sm:$0xf]
  %v253 = vld [vmem:[%s249 + $0x18] sm:$0xf]
  %v254 = vld [vmem:[%s249 + $0x20] sm:$0xf]
  %v255 = vld [vmem:[%s249 + $0x28] sm:$0xf]
  %v256 = vld [vmem:[%s249 + $0x30] sm:$0xf]
  %v257 = vld [vmem:[%s249 + $0x38] sm:$0xf]
  %v266 = vunpack.c.l.b16 %v250
  %v267 = vunpack.c.l.b16 %v251
  %v268 = vunpack.c.l.b16 %v252
  %v269 = vunpack.c.l.b16 %v253
  %v270 = vunpack.c.l.b16 %v254
  %v271 = vunpack.c.l.b16 %v255
  %v272 = vunpack.c.l.b16 %v256
  %v273 = vunpack.c.l.b16 %v257
  %v274 = vpack.c.b16 %v267, %v266
  %v275 = vpack.c.b16 %v269, %v268
  %v276 = vpack.c.b16 %v271, %v270
  %v277 = vpack.c.b16 %v273, %v272
  %278 = vrot.lane.b32.xlu0 %v274, 64
  %v279 = vpop.permute.xlu0 %278
  %280 = vrot.lane.b32.xlu0 %v275, 64
  %v281 = vpop.permute.xlu0 %280
  %282 = vrot.lane.b32.xlu0 %v276, 64
  %v283 = vpop.permute.xlu0 %282
  %284 = vrot.lane.b32.xlu0 %v277, 64
  %v285 = vpop.permute.xlu0 %284
  %290 = vst.msk [vmem:[#allocation2 + $0x8] sm:$0xff] %vm93, %v279
  %291 = vst.msk [vmem:[#allocation2 + $0x30] sm:$0xff] %vm93, %v281
  %292 = vst.msk [vmem:[#allocation2 + $0x58] sm:$0xff] %vm93, %v283
  %293 = vst.msk [vmem:[#allocation2 + $0x80] sm:$0xff] %vm93, %v285
  %s294 = scalar_lea.vmem %s0, 216
  %v295 = vld [vmem:[%s294] sm:$0xf]
  %v296 = vld [vmem:[%s294 + $0x8] sm:$0xf]
  %v297 = vld [vmem:[%s294 + $0x10] sm:$0xf]
  %v298 = vld [vmem:[%s294 + $0x18] sm:$0xf]
  %v299 = vld [vmem:[%s294 + $0x20] sm:$0xf]
  %v300 = vld [vmem:[%s294 + $0x28] sm:$0xf]
  %v301 = vld [vmem:[%s294 + $0x30] sm:$0xf]
  %v302 = vld [vmem:[%s294 + $0x38] sm:$0xf]
  %v311 = vunpack.c.l.b16 %v295
  %v312 = vunpack.c.l.b16 %v296
  %v313 = vunpack.c.l.b16 %v297
  %v314 = vunpack.c.l.b16 %v298
  %v315 = vunpack.c.l.b16 %v299
  %v316 = vunpack.c.l.b16 %v300
  %v317 = vunpack.c.l.b16 %v301
  %v318 = vunpack.c.l.b16 %v302
  %v319 = vpack.c.b16 %v312, %v311
  %v320 = vpack.c.b16 %v314, %v313
  %v321 = vpack.c.b16 %v316, %v315
  %v322 = vpack.c.b16 %v318, %v317
  %327 = vst.msk [vmem:[#allocation2 + $0x10] sm:$0xff] %vm47, %v319
  %328 = vst.msk [vmem:[#allocation2 + $0x38] sm:$0xff] %vm47, %v320
  %329 = vst.msk [vmem:[#allocation2 + $0x60] sm:$0xff] %vm47, %v321
  %330 = vst.msk [vmem:[#allocation2 + $0x88] sm:$0xff] %vm47, %v322
  %v331 = vld [vmem:[%s249] sm:$0xf]
  %v332 = vld [vmem:[%s249 + $0x4] sm:$0x1]
  %v333 = vld [vmem:[%s249 + $0x8] sm:$0xf]
  %v334 = vld [vmem:[%s249 + $0xc] sm:$0x1]
  %v335 = vld [vmem:[%s249 + $0x10] sm:$0xf]
  %v336 = vld [vmem:[%s249 + $0x14] sm:$0x1]
  %v337 = vld [vmem:[%s249 + $0x18] sm:$0xf]
  %v338 = vld [vmem:[%s249 + $0x1c] sm:$0x1]
  %v339 = vld [vmem:[%s249 + $0x20] sm:$0xf]
  %v340 = vld [vmem:[%s249 + $0x24] sm:$0x1]
  %v341 = vld [vmem:[%s249 + $0x28] sm:$0xf]
  %v342 = vld [vmem:[%s249 + $0x2c] sm:$0x1]
  %v343 = vld [vmem:[%s249 + $0x30] sm:$0xf]
  %v344 = vld [vmem:[%s249 + $0x34] sm:$0x1]
  %v345 = vld [vmem:[%s249 + $0x38] sm:$0xf]
  %v346 = vld [vmem:[%s249 + $0x3c] sm:$0x1]
  %v348 = vshrl.u32 %v331, 16
  %v350 = vrot.slane %v348, 4
  %v351 = vshll.u32 %v331, 16
  %v353 = vrot.slane %v351, 5
  %v354 = vor.u32 %v350, %v353
  %v355 = vrot.slane %v354, 4
  %v357 = vshll.u32 %v332, 16
  %v359 = vrot.slane %v357, 5
  %v360 = vsel %vm116, %v355, %v359
  %v362 = vshrl.u32 %v333, 16
  %v364 = vrot.slane %v362, 4
  %v365 = vshll.u32 %v333, 16
  %v367 = vrot.slane %v365, 5
  %v368 = vor.u32 %v364, %v367
  %v369 = vrot.slane %v368, 4
  %v371 = vshll.u32 %v334, 16
  %v373 = vrot.slane %v371, 5
  %v374 = vsel %vm116, %v369, %v373
  %v376 = vshrl.u32 %v335, 16
  %v378 = vrot.slane %v376, 4
  %v379 = vshll.u32 %v335, 16
  %v381 = vrot.slane %v379, 5
  %v382 = vor.u32 %v378, %v381
  %v383 = vrot.slane %v382, 4
  %v385 = vshll.u32 %v336, 16
  %v387 = vrot.slane %v385, 5
  %v388 = vsel %vm116, %v383, %v387
  %v390 = vshrl.u32 %v337, 16
  %v392 = vrot.slane %v390, 4
  %v393 = vshll.u32 %v337, 16
  %v395 = vrot.slane %v393, 5
  %v396 = vor.u32 %v392, %v395
  %v397 = vrot.slane %v396, 4
  %v399 = vshll.u32 %v338, 16
  %v401 = vrot.slane %v399, 5
  %v402 = vsel %vm116, %v397, %v401
  %v404 = vshrl.u32 %v339, 16
  %v406 = vrot.slane %v404, 4
  %v407 = vshll.u32 %v339, 16
  %v409 = vrot.slane %v407, 5
  %v410 = vor.u32 %v406, %v409
  %v411 = vrot.slane %v410, 4
  %v413 = vshll.u32 %v340, 16
  %v415 = vrot.slane %v413, 5
  %v416 = vsel %vm116, %v411, %v415
  %v418 = vshrl.u32 %v341, 16
  %v420 = vrot.slane %v418, 4
  %v421 = vshll.u32 %v341, 16
  %v423 = vrot.slane %v421, 5
  %v424 = vor.u32 %v420, %v423
  %v425 = vrot.slane %v424, 4
  %v427 = vshll.u32 %v342, 16
  %v429 = vrot.slane %v427, 5
  %v430 = vsel %vm116, %v425, %v429
  %v432 = vshrl.u32 %v343, 16
  %v434 = vrot.slane %v432, 4
  %v435 = vshll.u32 %v343, 16
  %v437 = vrot.slane %v435, 5
  %v438 = vor.u32 %v434, %v437
  %v439 = vrot.slane %v438, 4
  %v441 = vshll.u32 %v344, 16
  %v443 = vrot.slane %v441, 5
  %v444 = vsel %vm116, %v439, %v443
  %v446 = vshrl.u32 %v345, 16
  %v448 = vrot.slane %v446, 4
  %v449 = vshll.u32 %v345, 16
  %v451 = vrot.slane %v449, 5
  %v452 = vor.u32 %v448, %v451
  %v453 = vrot.slane %v452, 4
  %v455 = vshll.u32 %v346, 16
  %v457 = vrot.slane %v455, 5
  %v458 = vsel %vm116, %v453, %v457
  %v459 = vunpack.c.l.b16 %v360
  %v460 = vunpack.c.l.b16 %v374
  %v461 = vunpack.c.l.b16 %v388
  %v462 = vunpack.c.l.b16 %v402
  %v463 = vunpack.c.l.b16 %v416
  %v464 = vunpack.c.l.b16 %v430
  %v465 = vunpack.c.l.b16 %v444
  %v466 = vunpack.c.l.b16 %v458
  %v467 = vpack.c.b16 %v460, %v459
  %v468 = vpack.c.b16 %v462, %v461
  %v469 = vpack.c.b16 %v464, %v463
  %v470 = vpack.c.b16 %v466, %v465
  %471 = vrot.lane.b32.xlu0 %v467, 64
  %v472 = vpop.permute.xlu0 %471
  %473 = vrot.lane.b32.xlu0 %v468, 64
  %v474 = vpop.permute.xlu0 %473
  %475 = vrot.lane.b32.xlu0 %v469, 64
  %v476 = vpop.permute.xlu0 %475
  %477 = vrot.lane.b32.xlu0 %v470, 64
  %v478 = vpop.permute.xlu0 %477
  %483 = vst.msk [vmem:[#allocation2 + $0x10] sm:$0xff] %vm93, %v472
  %484 = vst.msk [vmem:[#allocation2 + $0x38] sm:$0xff] %vm93, %v474
  %485 = vst.msk [vmem:[#allocation2 + $0x60] sm:$0xff] %vm93, %v476
  %486 = vst.msk [vmem:[#allocation2 + $0x88] sm:$0xff] %vm93, %v478
  %s487 = scalar_lea.vmem %s0, 8
  %v488 = vld [vmem:[%s487] sm:$0xf]
  %v489 = vld [vmem:[%s487 + $0x8] sm:$0xf]
  %v490 = vld [vmem:[%s487 + $0x10] sm:$0xf]
  %v491 = vld [vmem:[%s487 + $0x18] sm:$0xf]
  %v492 = vld [vmem:[%s487 + $0x20] sm:$0xf]
  %v493 = vld [vmem:[%s487 + $0x28] sm:$0xf]
  %v494 = vld [vmem:[%s487 + $0x30] sm:$0xf]
  %v495 = vld [vmem:[%s487 + $0x38] sm:$0xf]
  %v504 = vunpack.c.l.b16 %v488
  %v505 = vunpack.c.l.b16 %v489
  %v506 = vunpack.c.l.b16 %v490
  %v507 = vunpack.c.l.b16 %v491
  %v508 = vunpack.c.l.b16 %v492
  %v509 = vunpack.c.l.b16 %v493
  %v510 = vunpack.c.l.b16 %v494
  %v511 = vunpack.c.l.b16 %v495
  %v512 = vpack.c.b16 %v505, %v504
  %v513 = vpack.c.b16 %v507, %v506
  %v514 = vpack.c.b16 %v509, %v508
  %v515 = vpack.c.b16 %v511, %v510
  %520 = vst.msk [vmem:[#allocation2 + $0x18] sm:$0xff] %vm47, %v512
  %521 = vst.msk [vmem:[#allocation2 + $0x40] sm:$0xff] %vm47, %v513
  %522 = vst.msk [vmem:[#allocation2 + $0x68] sm:$0xff] %vm47, %v514
  %523 = vst.msk [vmem:[#allocation2 + $0x90] sm:$0xff] %vm47, %v515
  %s524 = scalar_lea.vmem %s0, 80
  %v525 = vld [vmem:[%s524] sm:$0xf]
  %v526 = vld [vmem:[%s524 + $0x8] sm:$0xf]
  %v527 = vld [vmem:[%s524 + $0x10] sm:$0xf]
  %v528 = vld [vmem:[%s524 + $0x18] sm:$0xf]
  %v529 = vld [vmem:[%s524 + $0x20] sm:$0xf]
  %v530 = vld [vmem:[%s524 + $0x28] sm:$0xf]
  %v531 = vld [vmem:[%s524 + $0x30] sm:$0xf]
  %v532 = vld [vmem:[%s524 + $0x38] sm:$0xf]
  %v541 = vunpack.c.l.b16 %v525
  %v542 = vunpack.c.l.b16 %v526
  %v543 = vunpack.c.l.b16 %v527
  %v544 = vunpack.c.l.b16 %v528
  %v545 = vunpack.c.l.b16 %v529
  %v546 = vunpack.c.l.b16 %v530
  %v547 = vunpack.c.l.b16 %v531
  %v548 = vunpack.c.l.b16 %v532
  %v549 = vpack.c.b16 %v542, %v541
  %v550 = vpack.c.b16 %v544, %v543
  %v551 = vpack.c.b16 %v546, %v545
  %v552 = vpack.c.b16 %v548, %v547
  %553 = vrot.lane.b32.xlu0 %v549, 64
  %v554 = vpop.permute.xlu0 %553
  %555 = vrot.lane.b32.xlu0 %v550, 64
  %v556 = vpop.permute.xlu0 %555
  %557 = vrot.lane.b32.xlu0 %v551, 64
  %v558 = vpop.permute.xlu0 %557
  %559 = vrot.lane.b32.xlu0 %v552, 64
  %v560 = vpop.permute.xlu0 %559
  %565 = vst.msk [vmem:[#allocation2 + $0x18] sm:$0xff] %vm93, %v554
  %566 = vst.msk [vmem:[#allocation2 + $0x40] sm:$0xff] %vm93, %v556
  %567 = vst.msk [vmem:[#allocation2 + $0x68] sm:$0xff] %vm93, %v558
  %568 = vst.msk [vmem:[#allocation2 + $0x90] sm:$0xff] %vm93, %v560
  %v569 = vld [vmem:[%s487] sm:$0xf]
  %v570 = vld [vmem:[%s487 + $0x4] sm:$0x1]
  %v571 = vld [vmem:[%s487 + $0x8] sm:$0xf]
  %v572 = vld [vmem:[%s487 + $0xc] sm:$0x1]
  %v573 = vld [vmem:[%s487 + $0x10] sm:$0xf]
  %v574 = vld [vmem:[%s487 + $0x14] sm:$0x1]
  %v575 = vld [vmem:[%s487 + $0x18] sm:$0xf]
  %v576 = vld [vmem:[%s487 + $0x1c] sm:$0x1]
  %v577 = vld [vmem:[%s487 + $0x20] sm:$0xf]
  %v578 = vld [vmem:[%s487 + $0x24] sm:$0x1]
  %v579 = vld [vmem:[%s487 + $0x28] sm:$0xf]
  %v580 = vld [vmem:[%s487 + $0x2c] sm:$0x1]
  %v581 = vld [vmem:[%s487 + $0x30] sm:$0xf]
  %v582 = vld [vmem:[%s487 + $0x34] sm:$0x1]
  %v583 = vld [vmem:[%s487 + $0x38] sm:$0xf]
  %v584 = vld [vmem:[%s487 + $0x3c] sm:$0x1]
  %v586 = vshrl.u32 %v569, 16
  %v588 = vrot.slane %v586, 4
  %v589 = vshll.u32 %v569, 16
  %v591 = vrot.slane %v589, 5
  %v592 = vor.u32 %v588, %v591
  %v593 = vrot.slane %v592, 4
  %v595 = vshll.u32 %v570, 16
  %v597 = vrot.slane %v595, 5
  %v598 = vsel %vm116, %v593, %v597
  %v600 = vshrl.u32 %v571, 16
  %v602 = vrot.slane %v600, 4
  %v603 = vshll.u32 %v571, 16
  %v605 = vrot.slane %v603, 5
  %v606 = vor.u32 %v602, %v605
  %v607 = vrot.slane %v606, 4
  %v609 = vshll.u32 %v572, 16
  %v611 = vrot.slane %v609, 5
  %v612 = vsel %vm116, %v607, %v611
  %v614 = vshrl.u32 %v573, 16
  %v616 = vrot.slane %v614, 4
  %v617 = vshll.u32 %v573, 16
  %v619 = vrot.slane %v617, 5
  %v620 = vor.u32 %v616, %v619
  %v621 = vrot.slane %v620, 4
  %v623 = vshll.u32 %v574, 16
  %v625 = vrot.slane %v623, 5
  %v626 = vsel %vm116, %v621, %v625
  %v628 = vshrl.u32 %v575, 16
  %v630 = vrot.slane %v628, 4
  %v631 = vshll.u32 %v575, 16
  %v633 = vrot.slane %v631, 5
  %v634 = vor.u32 %v630, %v633
  %v635 = vrot.slane %v634, 4
  %v637 = vshll.u32 %v576, 16
  %v639 = vrot.slane %v637, 5
  %v640 = vsel %vm116, %v635, %v639
  %v642 = vshrl.u32 %v577, 16
  %v644 = vrot.slane %v642, 4
  %v645 = vshll.u32 %v577, 16
  %v647 = vrot.slane %v645, 5
  %v648 = vor.u32 %v644, %v647
  %v649 = vrot.slane %v648, 4
  %v651 = vshll.u32 %v578, 16
  %v653 = vrot.slane %v651, 5
  %v654 = vsel %vm116, %v649, %v653
  %v656 = vshrl.u32 %v579, 16
  %v658 = vrot.slane %v656, 4
  %v659 = vshll.u32 %v579, 16
  %v661 = vrot.slane %v659, 5
  %v662 = vor.u32 %v658, %v661
  %v663 = vrot.slane %v662, 4
  %v665 = vshll.u32 %v580, 16
  %v667 = vrot.slane %v665, 5
  %v668 = vsel %vm116, %v663, %v667
  %v670 = vshrl.u32 %v581, 16
  %v672 = vrot.slane %v670, 4
  %v673 = vshll.u32 %v581, 16
  %v675 = vrot.slane %v673, 5
  %v676 = vor.u32 %v672, %v675
  %v677 = vrot.slane %v676, 4
  %v679 = vshll.u32 %v582, 16
  %v681 = vrot.slane %v679, 5
  %v682 = vsel %vm116, %v677, %v681
  %v684 = vshrl.u32 %v583, 16
  %v686 = vrot.slane %v684, 4
  %v687 = vshll.u32 %v583, 16
  %v689 = vrot.slane %v687, 5
  %v690 = vor.u32 %v686, %v689
  %v691 = vrot.slane %v690, 4
  %v693 = vshll.u32 %v584, 16
  %v695 = vrot.slane %v693, 5
  %v696 = vsel %vm116, %v691, %v695
  %v697 = vunpack.c.l.b16 %v598
  %v698 = vunpack.c.l.b16 %v612
  %v699 = vunpack.c.l.b16 %v626
  %v700 = vunpack.c.l.b16 %v640
  %v701 = vunpack.c.l.b16 %v654
  %v702 = vunpack.c.l.b16 %v668
  %v703 = vunpack.c.l.b16 %v682
  %v704 = vunpack.c.l.b16 %v696
  %v705 = vpack.c.b16 %v698, %v697
  %v706 = vpack.c.b16 %v700, %v699
  %v707 = vpack.c.b16 %v702, %v701
  %v708 = vpack.c.b16 %v704, %v703
  %713 = vst.msk [vmem:[#allocation2 + $0x20] sm:$0xff] %vm47, %v705
  %714 = vst.msk [vmem:[#allocation2 + $0x48] sm:$0xff] %vm47, %v706
  %715 = vst.msk [vmem:[#allocation2 + $0x70] sm:$0xff] %vm47, %v707
  %716 = vst.msk [vmem:[#allocation2 + $0x98] sm:$0xff] %vm47, %v708
  %s717 = scalar_lea.vmem %s0, 288
  %v718 = vld [vmem:[%s717] sm:$0xf]
  %v719 = vld [vmem:[%s717 + $0x8] sm:$0xf]
  %v720 = vld [vmem:[%s717 + $0x10] sm:$0xf]
  %v721 = vld [vmem:[%s717 + $0x18] sm:$0xf]
  %v722 = vld [vmem:[%s717 + $0x20] sm:$0xf]
  %v723 = vld [vmem:[%s717 + $0x28] sm:$0xf]
  %v724 = vld [vmem:[%s717 + $0x30] sm:$0xf]
  %v725 = vld [vmem:[%s717 + $0x38] sm:$0xf]
  %v734 = vunpack.c.l.b16 %v718
  %v735 = vunpack.c.l.b16 %v719
  %v736 = vunpack.c.l.b16 %v720
  %v737 = vunpack.c.l.b16 %v721
  %v738 = vunpack.c.l.b16 %v722
  %v739 = vunpack.c.l.b16 %v723
  %v740 = vunpack.c.l.b16 %v724
  %v741 = vunpack.c.l.b16 %v725
  %v742 = vpack.c.b16 %v735, %v734
  %v743 = vpack.c.b16 %v737, %v736
  %v744 = vpack.c.b16 %v739, %v738
  %v745 = vpack.c.b16 %v741, %v740
  %750 = vst.msk [vmem:[#allocation2 + $0xa0] sm:$0xff] %vm47, %v742
  %751 = vst.msk [vmem:[#allocation2 + $0xc8] sm:$0xff] %vm47, %v743
  %752 = vst.msk [vmem:[#allocation2 + $0xf0] sm:$0xff] %vm47, %v744
  %753 = vst.msk [vmem:[#allocation2 + $0x118] sm:$0xff] %vm47, %v745
  %s754 = scalar_lea.vmem %s0, 360
  %v755 = vld [vmem:[%s754] sm:$0xf]
  %v756 = vld [vmem:[%s754 + $0x8] sm:$0xf]
  %v757 = vld [vmem:[%s754 + $0x10] sm:$0xf]
  %v758 = vld [vmem:[%s754 + $0x18] sm:$0xf]
  %v759 = vld [vmem:[%s754 + $0x20] sm:$0xf]
  %v760 = vld [vmem:[%s754 + $0x28] sm:$0xf]
  %v761 = vld [vmem:[%s754 + $0x30] sm:$0xf]
  %v762 = vld [vmem:[%s754 + $0x38] sm:$0xf]
  %v771 = vunpack.c.l.b16 %v755
  %v772 = vunpack.c.l.b16 %v756
  %v773 = vunpack.c.l.b16 %v757
  %v774 = vunpack.c.l.b16 %v758
  %v775 = vunpack.c.l.b16 %v759
  %v776 = vunpack.c.l.b16 %v760
  %v777 = vunpack.c.l.b16 %v761
  %v778 = vunpack.c.l.b16 %v762
  %v779 = vpack.c.b16 %v772, %v771
  %v780 = vpack.c.b16 %v774, %v773
  %v781 = vpack.c.b16 %v776, %v775
  %v782 = vpack.c.b16 %v778, %v777
  %783 = vrot.lane.b32.xlu0 %v779, 64
  %v784 = vpop.permute.xlu0 %783
  %785 = vrot.lane.b32.xlu0 %v780, 64
  %v786 = vpop.permute.xlu0 %785
  %787 = vrot.lane.b32.xlu0 %v781, 64
  %v788 = vpop.permute.xlu0 %787
  %789 = vrot.lane.b32.xlu0 %v782, 64
  %v790 = vpop.permute.xlu0 %789
  %795 = vst.msk [vmem:[#allocation2 + $0xa0] sm:$0xff] %vm93, %v784
  %796 = vst.msk [vmem:[#allocation2 + $0xc8] sm:$0xff] %vm93, %v786
  %797 = vst.msk [vmem:[#allocation2 + $0xf0] sm:$0xff] %vm93, %v788
  %798 = vst.msk [vmem:[#allocation2 + $0x118] sm:$0xff] %vm93, %v790
  %v799 = vld [vmem:[%s717] sm:$0xf]
  %v800 = vld [vmem:[%s717 + $0x4] sm:$0x1]
  %v801 = vld [vmem:[%s717 + $0x8] sm:$0xf]
  %v802 = vld [vmem:[%s717 + $0xc] sm:$0x1]
  %v803 = vld [vmem:[%s717 + $0x10] sm:$0xf]
  %v804 = vld [vmem:[%s717 + $0x14] sm:$0x1]
  %v805 = vld [vmem:[%s717 + $0x18] sm:$0xf]
  %v806 = vld [vmem:[%s717 + $0x1c] sm:$0x1]
  %v807 = vld [vmem:[%s717 + $0x20] sm:$0xf]
  %v808 = vld [vmem:[%s717 + $0x24] sm:$0x1]
  %v809 = vld [vmem:[%s717 + $0x28] sm:$0xf]
  %v810 = vld [vmem:[%s717 + $0x2c] sm:$0x1]
  %v811 = vld [vmem:[%s717 + $0x30] sm:$0xf]
  %v812 = vld [vmem:[%s717 + $0x34] sm:$0x1]
  %v813 = vld [vmem:[%s717 + $0x38] sm:$0xf]
  %v814 = vld [vmem:[%s717 + $0x3c] sm:$0x1]
  %v816 = vshrl.u32 %v799, 16
  %v818 = vrot.slane %v816, 4
  %v819 = vshll.u32 %v799, 16
  %v821 = vrot.slane %v819, 5
  %v822 = vor.u32 %v818, %v821
  %v823 = vrot.slane %v822, 4
  %v825 = vshll.u32 %v800, 16
  %v827 = vrot.slane %v825, 5
  %v828 = vsel %vm116, %v823, %v827
  %v830 = vshrl.u32 %v801, 16
  %v832 = vrot.slane %v830, 4
  %v833 = vshll.u32 %v801, 16
  %v835 = vrot.slane %v833, 5
  %v836 = vor.u32 %v832, %v835
  %v837 = vrot.slane %v836, 4
  %v839 = vshll.u32 %v802, 16
  %v841 = vrot.slane %v839, 5
  %v842 = vsel %vm116, %v837, %v841
  %v844 = vshrl.u32 %v803, 16
  %v846 = vrot.slane %v844, 4
  %v847 = vshll.u32 %v803, 16
  %v849 = vrot.slane %v847, 5
  %v850 = vor.u32 %v846, %v849
  %v851 = vrot.slane %v850, 4
  %v853 = vshll.u32 %v804, 16
  %v855 = vrot.slane %v853, 5
  %v856 = vsel %vm116, %v851, %v855
  %v858 = vshrl.u32 %v805, 16
  %v860 = vrot.slane %v858, 4
  %v861 = vshll.u32 %v805, 16
  %v863 = vrot.slane %v861, 5
  %v864 = vor.u32 %v860, %v863
  %v865 = vrot.slane %v864, 4
  %v867 = vshll.u32 %v806, 16
  %v869 = vrot.slane %v867, 5
  %v870 = vsel %vm116, %v865, %v869
  %v872 = vshrl.u32 %v807, 16
  %v874 = vrot.slane %v872, 4
  %v875 = vshll.u32 %v807, 16
  %v877 = vrot.slane %v875, 5
  %v878 = vor.u32 %v874, %v877
  %v879 = vrot.slane %v878, 4
  %v881 = vshll.u32 %v808, 16
  %v883 = vrot.slane %v881, 5
  %v884 = vsel %vm116, %v879, %v883
  %v886 = vshrl.u32 %v809, 16
  %v888 = vrot.slane %v886, 4
  %v889 = vshll.u32 %v809, 16
  %v891 = vrot.slane %v889, 5
  %v892 = vor.u32 %v888, %v891
  %v893 = vrot.slane %v892, 4
  %v895 = vshll.u32 %v810, 16
  %v897 = vrot.slane %v895, 5
  %v898 = vsel %vm116, %v893, %v897
  %v900 = vshrl.u32 %v811, 16
  %v902 = vrot.slane %v900, 4
  %v903 = vshll.u32 %v811, 16
  %v905 = vrot.slane %v903, 5
  %v906 = vor.u32 %v902, %v905
  %v907 = vrot.slane %v906, 4
  %v909 = vshll.u32 %v812, 16
  %v911 = vrot.slane %v909, 5
  %v912 = vsel %vm116, %v907, %v911
  %v914 = vshrl.u32 %v813, 16
  %v916 = vrot.slane %v914, 4
  %v917 = vshll.u32 %v813, 16
  %v919 = vrot.slane %v917, 5
  %v920 = vor.u32 %v916, %v919
  %v921 = vrot.slane %v920, 4
  %v923 = vshll.u32 %v814, 16
  %v925 = vrot.slane %v923, 5
  %v926 = vsel %vm116, %v921, %v925
  %v927 = vunpack.c.l.b16 %v828
  %v928 = vunpack.c.l.b16 %v842
  %v929 = vunpack.c.l.b16 %v856
  %v930 = vunpack.c.l.b16 %v870
  %v931 = vunpack.c.l.b16 %v884
  %v932 = vunpack.c.l.b16 %v898
  %v933 = vunpack.c.l.b16 %v912
  %v934 = vunpack.c.l.b16 %v926
  %v935 = vpack.c.b16 %v928, %v927
  %v936 = vpack.c.b16 %v930, %v929
  %v937 = vpack.c.b16 %v932, %v931
  %v938 = vpack.c.b16 %v934, %v933
  %943 = vst.msk [vmem:[#allocation2 + $0xa8] sm:$0xff] %vm47, %v935
  %944 = vst.msk [vmem:[#allocation2 + $0xd0] sm:$0xff] %vm47, %v936
  %945 = vst.msk [vmem:[#allocation2 + $0xf8] sm:$0xff] %vm47, %v937
  %946 = vst.msk [vmem:[#allocation2 + $0x120] sm:$0xff] %vm47, %v938
  %s947 = scalar_lea.vmem %s0, 432
  %v948 = vld [vmem:[%s947] sm:$0xf]
  %v949 = vld [vmem:[%s947 + $0x8] sm:$0xf]
  %v950 = vld [vmem:[%s947 + $0x10] sm:$0xf]
  %v951 = vld [vmem:[%s947 + $0x18] sm:$0xf]
  %v952 = vld [vmem:[%s947 + $0x20] sm:$0xf]
  %v953 = vld [vmem:[%s947 + $0x28] sm:$0xf]
  %v954 = vld [vmem:[%s947 + $0x30] sm:$0xf]
  %v955 = vld [vmem:[%s947 + $0x38] sm:$0xf]
  %v964 = vunpack.c.l.b16 %v948
  %v965 = vunpack.c.l.b16 %v949
  %v966 = vunpack.c.l.b16 %v950
  %v967 = vunpack.c.l.b16 %v951
  %v968 = vunpack.c.l.b16 %v952
  %v969 = vunpack.c.l.b16 %v953
  %v970 = vunpack.c.l.b16 %v954
  %v971 = vunpack.c.l.b16 %v955
  %v972 = vpack.c.b16 %v965, %v964
  %v973 = vpack.c.b16 %v967, %v966
  %v974 = vpack.c.b16 %v969, %v968
  %v975 = vpack.c.b16 %v971, %v970
  %976 = vrot.lane.b32.xlu0 %v972, 64
  %v977 = vpop.permute.xlu0 %976
  %978 = vrot.lane.b32.xlu0 %v973, 64
  %v979 = vpop.permute.xlu0 %978
  %980 = vrot.lane.b32.xlu0 %v974, 64
  %v981 = vpop.permute.xlu0 %980
  %982 = vrot.lane.b32.xlu0 %v975, 64
  %v983 = vpop.permute.xlu0 %982
  %988 = vst.msk [vmem:[#allocation2 + $0xa8] sm:$0xff] %vm93, %v977
  %989 = vst.msk [vmem:[#allocation2 + $0xd0] sm:$0xff] %vm93, %v979
  %990 = vst.msk [vmem:[#allocation2 + $0xf8] sm:$0xff] %vm93, %v981
  %991 = vst.msk [vmem:[#allocation2 + $0x120] sm:$0xff] %vm93, %v983
  %s992 = scalar_lea.vmem %s0, 504
  %v993 = vld [vmem:[%s992] sm:$0xf]
  %v994 = vld [vmem:[%s992 + $0x8] sm:$0xf]
  %v995 = vld [vmem:[%s992 + $0x10] sm:$0xf]
  %v996 = vld [vmem:[%s992 + $0x18] sm:$0xf]
  %v997 = vld [vmem:[%s992 + $0x20] sm:$0xf]
  %v998 = vld [vmem:[%s992 + $0x28] sm:$0xf]
  %v999 = vld [vmem:[%s992 + $0x30] sm:$0xf]
  %v1000 = vld [vmem:[%s992 + $0x38] sm:$0xf]
  %v1009 = vunpack.c.l.b16 %v993
  %v1010 = vunpack.c.l.b16 %v994
  %v1011 = vunpack.c.l.b16 %v995
  %v1012 = vunpack.c.l.b16 %v996
  %v1013 = vunpack.c.l.b16 %v997
  %v1014 = vunpack.c.l.b16 %v998
  %v1015 = vunpack.c.l.b16 %v999
  %v1016 = vunpack.c.l.b16 %v1000
  %v1017 = vpack.c.b16 %v1010, %v1009
  %v1018 = vpack.c.b16 %v1012, %v1011
  %v1019 = vpack.c.b16 %v1014, %v1013
  %v1020 = vpack.c.b16 %v1016, %v1015
  %1025 = vst.msk [vmem:[#allocation2 + $0xb0] sm:$0xff] %vm47, %v1017
  %1026 = vst.msk [vmem:[#allocation2 + $0xd8] sm:$0xff] %vm47, %v1018
  %1027 = vst.msk [vmem:[#allocation2 + $0x100] sm:$0xff] %vm47, %v1019
  %1028 = vst.msk [vmem:[#allocation2 + $0x128] sm:$0xff] %vm47, %v1020
  %v1029 = vld [vmem:[%s947] sm:$0xf]
  %v1030 = vld [vmem:[%s947 + $0x4] sm:$0x1]
  %v1031 = vld [vmem:[%s947 + $0x8] sm:$0xf]
  %v1032 = vld [vmem:[%s947 + $0xc] sm:$0x1]
  %v1033 = vld [vmem:[%s947 + $0x10] sm:$0xf]
  %v1034 = vld [vmem:[%s947 + $0x14] sm:$0x1]
  %v1035 = vld [vmem:[%s947 + $0x18] sm:$0xf]
  %v1036 = vld [vmem:[%s947 + $0x1c] sm:$0x1]
  %v1037 = vld [vmem:[%s947 + $0x20] sm:$0xf]
  %v1038 = vld [vmem:[%s947 + $0x24] sm:$0x1]
  %v1039 = vld [vmem:[%s947 + $0x28] sm:$0xf]
  %v1040 = vld [vmem:[%s947 + $0x2c] sm:$0x1]
  %v1041 = vld [vmem:[%s947 + $0x30] sm:$0xf]
  %v1042 = vld [vmem:[%s947 + $0x34] sm:$0x1]
  %v1043 = vld [vmem:[%s947 + $0x38] sm:$0xf]
  %v1044 = vld [vmem:[%s947 + $0x3c] sm:$0x1]
  %v1046 = vshrl.u32 %v1029, 16
  %v1048 = vrot.slane %v1046, 4
  %v1049 = vshll.u32 %v1029, 16
  %v1051 = vrot.slane %v1049, 5
  %v1052 = vor.u32 %v1048, %v1051
  %v1053 = vrot.slane %v1052, 4
  %v1055 = vshll.u32 %v1030, 16
  %v1057 = vrot.slane %v1055, 5
  %v1058 = vsel %vm116, %v1053, %v1057
  %v1060 = vshrl.u32 %v1031, 16
  %v1062 = vrot.slane %v1060, 4
  %v1063 = vshll.u32 %v1031, 16
  %v1065 = vrot.slane %v1063, 5
  %v1066 = vor.u32 %v1062, %v1065
  %v1067 = vrot.slane %v1066, 4
  %v1069 = vshll.u32 %v1032, 16
  %v1071 = vrot.slane %v1069, 5
  %v1072 = vsel %vm116, %v1067, %v1071
  %v1074 = vshrl.u32 %v1033, 16
  %v1076 = vrot.slane %v1074, 4
  %v1077 = vshll.u32 %v1033, 16
  %v1079 = vrot.slane %v1077, 5
  %v1080 = vor.u32 %v1076, %v1079
  %v1081 = vrot.slane %v1080, 4
  %v1083 = vshll.u32 %v1034, 16
  %v1085 = vrot.slane %v1083, 5
  %v1086 = vsel %vm116, %v1081, %v1085
  %v1088 = vshrl.u32 %v1035, 16
  %v1090 = vrot.slane %v1088, 4
  %v1091 = vshll.u32 %v1035, 16
  %v1093 = vrot.slane %v1091, 5
  %v1094 = vor.u32 %v1090, %v1093
  %v1095 = vrot.slane %v1094, 4
  %v1097 = vshll.u32 %v1036, 16
  %v1099 = vrot.slane %v1097, 5
  %v1100 = vsel %vm116, %v1095, %v1099
  %v1102 = vshrl.u32 %v1037, 16
  %v1104 = vrot.slane %v1102, 4
  %v1105 = vshll.u32 %v1037, 16
  %v1107 = vrot.slane %v1105, 5
  %v1108 = vor.u32 %v1104, %v1107
  %v1109 = vrot.slane %v1108, 4
  %v1111 = vshll.u32 %v1038, 16
  %v1113 = vrot.slane %v1111, 5
  %v1114 = vsel %vm116, %v1109, %v1113
  %v1116 = vshrl.u32 %v1039, 16
  %v1118 = vrot.slane %v1116, 4
  %v1119 = vshll.u32 %v1039, 16
  %v1121 = vrot.slane %v1119, 5
  %v1122 = vor.u32 %v1118, %v1121
  %v1123 = vrot.slane %v1122, 4
  %v1125 = vshll.u32 %v1040, 16
  %v1127 = vrot.slane %v1125, 5
  %v1128 = vsel %vm116, %v1123, %v1127
  %v1130 = vshrl.u32 %v1041, 16
  %v1132 = vrot.slane %v1130, 4
  %v1133 = vshll.u32 %v1041, 16
  %v1135 = vrot.slane %v1133, 5
  %v1136 = vor.u32 %v1132, %v1135
  %v1137 = vrot.slane %v1136, 4
  %v1139 = vshll.u32 %v1042, 16
  %v1141 = vrot.slane %v1139, 5
  %v1142 = vsel %vm116, %v1137, %v1141
  %v1144 = vshrl.u32 %v1043, 16
  %v1146 = vrot.slane %v1144, 4
  %v1147 = vshll.u32 %v1043, 16
  %v1149 = vrot.slane %v1147, 5
  %v1150 = vor.u32 %v1146, %v1149
  %v1151 = vrot.slane %v1150, 4
  %v1153 = vshll.u32 %v1044, 16
  %v1155 = vrot.slane %v1153, 5
  %v1156 = vsel %vm116, %v1151, %v1155
  %v1157 = vunpack.c.l.b16 %v1058
  %v1158 = vunpack.c.l.b16 %v1072
  %v1159 = vunpack.c.l.b16 %v1086
  %v1160 = vunpack.c.l.b16 %v1100
  %v1161 = vunpack.c.l.b16 %v1114
  %v1162 = vunpack.c.l.b16 %v1128
  %v1163 = vunpack.c.l.b16 %v1142
  %v1164 = vunpack.c.l.b16 %v1156
  %v1165 = vpack.c.b16 %v1158, %v1157
  %v1166 = vpack.c.b16 %v1160, %v1159
  %v1167 = vpack.c.b16 %v1162, %v1161
  %v1168 = vpack.c.b16 %v1164, %v1163
  %1169 = vrot.lane.b32.xlu0 %v1165, 64
  %v1170 = vpop.permute.xlu0 %1169
  %1171 = vrot.lane.b32.xlu0 %v1166, 64
  %v1172 = vpop.permute.xlu0 %1171
  %1173 = vrot.lane.b32.xlu0 %v1167, 64
  %v1174 = vpop.permute.xlu0 %1173
  %1175 = vrot.lane.b32.xlu0 %v1168, 64
  %v1176 = vpop.permute.xlu0 %1175
  %1181 = vst.msk [vmem:[#allocation2 + $0xb0] sm:$0xff] %vm93, %v1170
  %1182 = vst.msk [vmem:[#allocation2 + $0xd8] sm:$0xff] %vm93, %v1172
  %1183 = vst.msk [vmem:[#allocation2 + $0x100] sm:$0xff] %vm93, %v1174
  %1184 = vst.msk [vmem:[#allocation2 + $0x128] sm:$0xff] %vm93, %v1176
  %s1185 = scalar_lea.vmem %s0, 296
  %v1186 = vld [vmem:[%s1185] sm:$0xf]
  %v1187 = vld [vmem:[%s1185 + $0x8] sm:$0xf]
  %v1188 = vld [vmem:[%s1185 + $0x10] sm:$0xf]
  %v1189 = vld [vmem:[%s1185 + $0x18] sm:$0xf]
  %v1190 = vld [vmem:[%s1185 + $0x20] sm:$0xf]
  %v1191 = vld [vmem:[%s1185 + $0x28] sm:$0xf]
  %v1192 = vld [vmem:[%s1185 + $0x30] sm:$0xf]
  %v1193 = vld [vmem:[%s1185 + $0x38] sm:$0xf]
  %v1202 = vunpack.c.l.b16 %v1186
  %v1203 = vunpack.c.l.b16 %v1187
  %v1204 = vunpack.c.l.b16 %v1188
  %v1205 = vunpack.c.l.b16 %v1189
  %v1206 = vunpack.c.l.b16 %v1190
  %v1207 = vunpack.c.l.b16 %v1191
  %v1208 = vunpack.c.l.b16 %v1192
  %v1209 = vunpack.c.l.b16 %v1193
  %v1210 = vpack.c.b16 %v1203, %v1202
  %v1211 = vpack.c.b16 %v1205, %v1204
  %v1212 = vpack.c.b16 %v1207, %v1206
  %v1213 = vpack.c.b16 %v1209, %v1208
  %1218 = vst.msk [vmem:[#allocation2 + $0xb8] sm:$0xff] %vm47, %v1210
  %1219 = vst.msk [vmem:[#allocation2 + $0xe0] sm:$0xff] %vm47, %v1211
  %1220 = vst.msk [vmem:[#allocation2 + $0x108] sm:$0xff] %vm47, %v1212
  %1221 = vst.msk [vmem:[#allocation2 + $0x130] sm:$0xff] %vm47, %v1213
  %s1222 = scalar_lea.vmem %s0, 368
  %v1223 = vld [vmem:[%s1222] sm:$0xf]
  %v1224 = vld [vmem:[%s1222 + $0x8] sm:$0xf]
  %v1225 = vld [vmem:[%s1222 + $0x10] sm:$0xf]
  %v1226 = vld [vmem:[%s1222 + $0x18] sm:$0xf]
  %v1227 = vld [vmem:[%s1222 + $0x20] sm:$0xf]
  %v1228 = vld [vmem:[%s1222 + $0x28] sm:$0xf]
  %v1229 = vld [vmem:[%s1222 + $0x30] sm:$0xf]
  %v1230 = vld [vmem:[%s1222 + $0x38] sm:$0xf]
  %v1239 = vunpack.c.l.b16 %v1223
  %v1240 = vunpack.c.l.b16 %v1224
  %v1241 = vunpack.c.l.b16 %v1225
  %v1242 = vunpack.c.l.b16 %v1226
  %v1243 = vunpack.c.l.b16 %v1227
  %v1244 = vunpack.c.l.b16 %v1228
  %v1245 = vunpack.c.l.b16 %v1229
  %v1246 = vunpack.c.l.b16 %v1230
  %v1247 = vpack.c.b16 %v1240, %v1239
  %v1248 = vpack.c.b16 %v1242, %v1241
  %v1249 = vpack.c.b16 %v1244, %v1243
  %v1250 = vpack.c.b16 %v1246, %v1245
  %1251 = vrot.lane.b32.xlu0 %v1247, 64
  %v1252 = vpop.permute.xlu0 %1251
  %1253 = vrot.lane.b32.xlu0 %v1248, 64
  %v1254 = vpop.permute.xlu0 %1253
  %1255 = vrot.lane.b32.xlu0 %v1249, 64
  %v1256 = vpop.permute.xlu0 %1255
  %1257 = vrot.lane.b32.xlu0 %v1250, 64
  %v1258 = vpop.permute.xlu0 %1257
  %1263 = vst.msk [vmem:[#allocation2 + $0xb8] sm:$0xff] %vm93, %v1252
  %1264 = vst.msk [vmem:[#allocation2 + $0xe0] sm:$0xff] %vm93, %v1254
  %1265 = vst.msk [vmem:[#allocation2 + $0x108] sm:$0xff] %vm93, %v1256
  %1266 = vst.msk [vmem:[#allocation2 + $0x130] sm:$0xff] %vm93, %v1258
  %v1267 = vld [vmem:[%s1185] sm:$0xf]
  %v1268 = vld [vmem:[%s1185 + $0x4] sm:$0x1]
  %v1269 = vld [vmem:[%s1185 + $0x8] sm:$0xf]
  %v1270 = vld [vmem:[%s1185 + $0xc] sm:$0x1]
  %v1271 = vld [vmem:[%s1185 + $0x10] sm:$0xf]
  %v1272 = vld [vmem:[%s1185 + $0x14] sm:$0x1]
  %v1273 = vld [vmem:[%s1185 + $0x18] sm:$0xf]
  %v1274 = vld [vmem:[%s1185 + $0x1c] sm:$0x1]
  %v1275 = vld [vmem:[%s1185 + $0x20] sm:$0xf]
  %v1276 = vld [vmem:[%s1185 + $0x24] sm:$0x1]
  %v1277 = vld [vmem:[%s1185 + $0x28] sm:$0xf]
  %v1278 = vld [vmem:[%s1185 + $0x2c] sm:$0x1]
  %v1279 = vld [vmem:[%s1185 + $0x30] sm:$0xf]
  %v1280 = vld [vmem:[%s1185 + $0x34] sm:$0x1]
  %v1281 = vld [vmem:[%s1185 + $0x38] sm:$0xf]
  %v1282 = vld [vmem:[%s1185 + $0x3c] sm:$0x1]
  %v1284 = vshrl.u32 %v1267, 16
  %v1286 = vrot.slane %v1284, 4
  %v1287 = vshll.u32 %v1267, 16
  %v1289 = vrot.slane %v1287, 5
  %v1290 = vor.u32 %v1286, %v1289
  %v1291 = vrot.slane %v1290, 4
  %v1293 = vshll.u32 %v1268, 16
  %v1295 = vrot.slane %v1293, 5
  %v1296 = vsel %vm116, %v1291, %v1295
  %v1298 = vshrl.u32 %v1269, 16
  %v1300 = vrot.slane %v1298, 4
  %v1301 = vshll.u32 %v1269, 16
  %v1303 = vrot.slane %v1301, 5
  %v1304 = vor.u32 %v1300, %v1303
  %v1305 = vrot.slane %v1304, 4
  %v1307 = vshll.u32 %v1270, 16
  %v1309 = vrot.slane %v1307, 5
  %v1310 = vsel %vm116, %v1305, %v1309
  %v1312 = vshrl.u32 %v1271, 16
  %v1314 = vrot.slane %v1312, 4
  %v1315 = vshll.u32 %v1271, 16
  %v1317 = vrot.slane %v1315, 5
  %v1318 = vor.u32 %v1314, %v1317
  %v1319 = vrot.slane %v1318, 4
  %v1321 = vshll.u32 %v1272, 16
  %v1323 = vrot.slane %v1321, 5
  %v1324 = vsel %vm116, %v1319, %v1323
  %v1326 = vshrl.u32 %v1273, 16
  %v1328 = vrot.slane %v1326, 4
  %v1329 = vshll.u32 %v1273, 16
  %v1331 = vrot.slane %v1329, 5
  %v1332 = vor.u32 %v1328, %v1331
  %v1333 = vrot.slane %v1332, 4
  %v1335 = vshll.u32 %v1274, 16
  %v1337 = vrot.slane %v1335, 5
  %v1338 = vsel %vm116, %v1333, %v1337
  %v1340 = vshrl.u32 %v1275, 16
  %v1342 = vrot.slane %v1340, 4
  %v1343 = vshll.u32 %v1275, 16
  %v1345 = vrot.slane %v1343, 5
  %v1346 = vor.u32 %v1342, %v1345
  %v1347 = vrot.slane %v1346, 4
  %v1349 = vshll.u32 %v1276, 16
  %v1351 = vrot.slane %v1349, 5
  %v1352 = vsel %vm116, %v1347, %v1351
  %v1354 = vshrl.u32 %v1277, 16
  %v1356 = vrot.slane %v1354, 4
  %v1357 = vshll.u32 %v1277, 16
  %v1359 = vrot.slane %v1357, 5
  %v1360 = vor.u32 %v1356, %v1359
  %v1361 = vrot.slane %v1360, 4
  %v1363 = vshll.u32 %v1278, 16
  %v1365 = vrot.slane %v1363, 5
  %v1366 = vsel %vm116, %v1361, %v1365
  %v1368 = vshrl.u32 %v1279, 16
  %v1370 = vrot.slane %v1368, 4
  %v1371 = vshll.u32 %v1279, 16
  %v1373 = vrot.slane %v1371, 5
  %v1374 = vor.u32 %v1370, %v1373
  %v1375 = vrot.slane %v1374, 4
  %v1377 = vshll.u32 %v1280, 16
  %v1379 = vrot.slane %v1377, 5
  %v1380 = vsel %vm116, %v1375, %v1379
  %v1382 = vshrl.u32 %v1281, 16
  %v1384 = vrot.slane %v1382, 4
  %v1385 = vshll.u32 %v1281, 16
  %v1387 = vrot.slane %v1385, 5
  %v1388 = vor.u32 %v1384, %v1387
  %v1389 = vrot.slane %v1388, 4
  %v1391 = vshll.u32 %v1282, 16
  %v1393 = vrot.slane %v1391, 5
  %v1394 = vsel %vm116, %v1389, %v1393
  %v1395 = vunpack.c.l.b16 %v1296
  %v1396 = vunpack.c.l.b16 %v1310
  %v1397 = vunpack.c.l.b16 %v1324
  %v1398 = vunpack.c.l.b16 %v1338
  %v1399 = vunpack.c.l.b16 %v1352
  %v1400 = vunpack.c.l.b16 %v1366
  %v1401 = vunpack.c.l.b16 %v1380
  %v1402 = vunpack.c.l.b16 %v1394
  %v1403 = vpack.c.b16 %v1396, %v1395
  %v1404 = vpack.c.b16 %v1398, %v1397
  %v1405 = vpack.c.b16 %v1400, %v1399
  %v1406 = vpack.c.b16 %v1402, %v1401
  %1411 = vst.msk [vmem:[#allocation2 + $0xc0] sm:$0xff] %vm47, %v1403
  %1412 = vst.msk [vmem:[#allocation2 + $0xe8] sm:$0xff] %vm47, %v1404
  %1413 = vst.msk [vmem:[#allocation2 + $0x110] sm:$0xff] %vm47, %v1405
  %1414 = vst.msk [vmem:[#allocation2 + $0x138] sm:$0xff] %vm47, %v1406
  %v1415 = vld [vmem:[#allocation2] sm:$0xff]
  %v1416 = vld [vmem:[#allocation2 + $0x8] sm:$0xff]
  %v1417 = vld [vmem:[#allocation2 + $0x10] sm:$0xff]
  %v1418 = vld [vmem:[#allocation2 + $0x18] sm:$0xff]
  %v1419 = vld [vmem:[#allocation2 + $0x20] sm:$0xff]
  %v1420 = vld [vmem:[#allocation2 + $0x28] sm:$0xff]
  %v1421 = vld [vmem:[#allocation2 + $0x30] sm:$0xff]
  %v1422 = vld [vmem:[#allocation2 + $0x38] sm:$0xff]
  %v1423 = vld [vmem:[#allocation2 + $0x40] sm:$0xff]
  %v1424 = vld [vmem:[#allocation2 + $0x48] sm:$0xff]
  %v1425 = vld [vmem:[#allocation2 + $0x50] sm:$0xff]
  %v1426 = vld [vmem:[#allocation2 + $0x58] sm:$0xff]
  %v1427 = vld [vmem:[#allocation2 + $0x60] sm:$0xff]
  %v1428 = vld [vmem:[#allocation2 + $0x68] sm:$0xff]
  %v1429 = vld [vmem:[#allocation2 + $0x70] sm:$0xff]
  %v1430 = vld [vmem:[#allocation2 + $0x78] sm:$0xff]
  %v1431 = vld [vmem:[#allocation2 + $0x80] sm:$0xff]
  %v1432 = vld [vmem:[#allocation2 + $0x88] sm:$0xff]
  %v1433 = vld [vmem:[#allocation2 + $0x90] sm:$0xff]
  %v1434 = vld [vmem:[#allocation2 + $0x98] sm:$0xff]
  %v1435 = vld [vmem:[#allocation2 + $0xa0] sm:$0xff]
  %v1436 = vld [vmem:[#allocation2 + $0xa8] sm:$0xff]
  %v1437 = vld [vmem:[#allocation2 + $0xb0] sm:$0xff]
  %v1438 = vld [vmem:[#allocation2 + $0xb8] sm:$0xff]
  %v1439 = vld [vmem:[#allocation2 + $0xc0] sm:$0xff]
  %v1440 = vld [vmem:[#allocation2 + $0xc8] sm:$0xff]
  %v1441 = vld [vmem:[#allocation2 + $0xd0] sm:$0xff]
  %v1442 = vld [vmem:[#allocation2 + $0xd8] sm:$0xff]
  %v1443 = vld [vmem:[#allocation2 + $0xe0] sm:$0xff]
  %v1444 = vld [vmem:[#allocation2 + $0xe8] sm:$0xff]
  %v1445 = vld [vmem:[#allocation2 + $0xf0] sm:$0xff]
  %v1446 = vld [vmem:[#allocation2 + $0xf8] sm:$0xff]
  %v1447 = vld [vmem:[#allocation2 + $0x100] sm:$0xff]
  %v1448 = vld [vmem:[#allocation2 + $0x108] sm:$0xff]
  %v1449 = vld [vmem:[#allocation2 + $0x110] sm:$0xff]
  %v1450 = vld [vmem:[#allocation2 + $0x118] sm:$0xff]
  %v1451 = vld [vmem:[#allocation2 + $0x120] sm:$0xff]
  %v1452 = vld [vmem:[#allocation2 + $0x128] sm:$0xff]
  %v1453 = vld [vmem:[#allocation2 + $0x130] sm:$0xff]
  %v1454 = vld [vmem:[#allocation2 + $0x138] sm:$0xff]
  %v1455 = vld [vmem:[%s1] sm:$0xf]
  %v1456 = vld [vmem:[%s1 + $0x4] sm:$0xf]
  %v1457 = vld [vmem:[%s1 + $0x8] sm:$0xf]
  %v1458 = vld [vmem:[%s1 + $0xc] sm:$0xf]
  %v1459 = vld [vmem:[%s1 + $0x10] sm:$0xf]
  %v1460 = vld [vmem:[%s1 + $0x14] sm:$0xf]
  %v1461 = vld [vmem:[%s1 + $0x18] sm:$0xf]
  %v1462 = vld [vmem:[%s1 + $0x1c] sm:$0xf]
  %v1463 = vld [vmem:[%s1 + $0x20] sm:$0xf]
  %v1464 = vld [vmem:[%s1 + $0x24] sm:$0xf]
  %v1465 = vld [vmem:[%s1 + $0x28] sm:$0xf]
  %v1466 = vld [vmem:[%s1 + $0x2c] sm:$0xf]
  %v1467 = vld [vmem:[%s1 + $0x30] sm:$0xf]
  %v1468 = vld [vmem:[%s1 + $0x34] sm:$0xf]
  %v1469 = vld [vmem:[%s1 + $0x38] sm:$0xf]
  %v1470 = vld [vmem:[%s1 + $0x3c] sm:$0xf]
  %v1471 = vld [vmem:[%s1 + $0x40] sm:$0xf]
  %v1472 = vld [vmem:[%s1 + $0x44] sm:$0xf]
  %v1473 = vld [vmem:[%s1 + $0x48] sm:$0xf]
  %v1474 = vld [vmem:[%s1 + $0x4c] sm:$0xf]
  %v1475 = vld [vmem:[%s1 + $0x50] sm:$0xf]
  %v1476 = vld [vmem:[%s1 + $0x54] sm:$0xf]
  %v1477 = vld [vmem:[%s1 + $0x58] sm:$0xf]
  %v1478 = vld [vmem:[%s1 + $0x5c] sm:$0xf]
  %v1479 = vld [vmem:[%s1 + $0x60] sm:$0xf]
  %v1480 = vld [vmem:[%s1 + $0x64] sm:$0xf]
  %v1481 = vld [vmem:[%s1 + $0x68] sm:$0xf]
  %v1482 = vld [vmem:[%s1 + $0x6c] sm:$0xf]
  %v1483 = vld [vmem:[%s1 + $0x70] sm:$0xf]
  %v1484 = vld [vmem:[%s1 + $0x74] sm:$0xf]
  %v1485 = vld [vmem:[%s1 + $0x78] sm:$0xf]
  %v1486 = vld [vmem:[%s1 + $0x7c] sm:$0xf]
  %v1487 = vld [vmem:[%s1 + $0x80] sm:$0xf]
  %v1488 = vld [vmem:[%s1 + $0x84] sm:$0xf]
  %v1489 = vld [vmem:[%s1 + $0x88] sm:$0xf]
  %v1490 = vld [vmem:[%s1 + $0x8c] sm:$0xf]
  %v1491 = vld [vmem:[%s1 + $0x90] sm:$0xf]
  %v1492 = vld [vmem:[%s1 + $0x94] sm:$0xf]
  %v1493 = vld [vmem:[%s1 + $0x98] sm:$0xf]
  %v1494 = vld [vmem:[%s1 + $0x9c] sm:$0xf]
  %v1495 = vld [vmem:[%s1 + $0xa0] sm:$0xf]
  %v1496 = vld [vmem:[%s1 + $0xa4] sm:$0xf]
  %v1497 = vld [vmem:[%s1 + $0xa8] sm:$0xf]
  %v1498 = vld [vmem:[%s1 + $0xac] sm:$0xf]
  %v1499 = vld [vmem:[%s1 + $0xb0] sm:$0xf]
  %v1500 = vld [vmem:[%s1 + $0xb4] sm:$0xf]
  %v1501 = vld [vmem:[%s1 + $0xb8] sm:$0xf]
  %v1502 = vld [vmem:[%s1 + $0xbc] sm:$0xf]
  %v1503 = vld [vmem:[%s1 + $0xc0] sm:$0xf]
  %v1504 = vld [vmem:[%s1 + $0xc4] sm:$0xf]
  %v1505 = vld [vmem:[%s1 + $0xc8] sm:$0xf]
  %v1506 = vld [vmem:[%s1 + $0xcc] sm:$0xf]
  %v1507 = vld [vmem:[%s1 + $0xd0] sm:$0xf]
  %v1508 = vld [vmem:[%s1 + $0xd4] sm:$0xf]
  %v1509 = vld [vmem:[%s1 + $0xd8] sm:$0xf]
  %v1510 = vld [vmem:[%s1 + $0xdc] sm:$0xf]
  %v1511 = vld [vmem:[%s1 + $0xe0] sm:$0xf]
  %v1512 = vld [vmem:[%s1 + $0xe4] sm:$0xf]
  %v1513 = vld [vmem:[%s1 + $0xe8] sm:$0xf]
  %v1514 = vld [vmem:[%s1 + $0xec] sm:$0xf]
  %v1515 = vld [vmem:[%s1 + $0xf0] sm:$0xf]
  %v1516 = vld [vmem:[%s1 + $0xf4] sm:$0xf]
  %v1517 = vld [vmem:[%s1 + $0xf8] sm:$0xf]
  %v1518 = vld [vmem:[%s1 + $0xfc] sm:$0xf]
  %v1519 = vld [vmem:[%s1 + $0x100] sm:$0xf]
  %v1520 = vld [vmem:[%s1 + $0x104] sm:$0xf]
  %v1521 = vld [vmem:[%s1 + $0x108] sm:$0xf]
  %v1522 = vld [vmem:[%s1 + $0x10c] sm:$0xf]
  %v1523 = vld [vmem:[%s1 + $0x110] sm:$0xf]
  %v1524 = vld [vmem:[%s1 + $0x114] sm:$0xf]
  %v1525 = vld [vmem:[%s1 + $0x118] sm:$0xf]
  %v1526 = vld [vmem:[%s1 + $0x11c] sm:$0xf]
  %v1599 = vunpack.c.l.b16 %v1455
  %v1600 = vunpack.c.l.b16 %v1456
  %v1601 = vunpack.c.l.b16 %v1457
  %v1602 = vunpack.c.l.b16 %v1458
  %v1603 = vunpack.c.l.b16 %v1459
  %v1604 = vunpack.c.l.b16 %v1460
  %v1605 = vunpack.c.l.b16 %v1461
  %v1606 = vunpack.c.l.b16 %v1462
  %v1607 = vunpack.c.l.b16 %v1463
  %v1608 = vunpack.c.l.b16 %v1464
  %v1609 = vunpack.c.l.b16 %v1465
  %v1610 = vunpack.c.l.b16 %v1466
  %v1611 = vunpack.c.l.b16 %v1467
  %v1612 = vunpack.c.l.b16 %v1468
  %v1613 = vunpack.c.l.b16 %v1469
  %v1614 = vunpack.c.l.b16 %v1470
  %v1615 = vunpack.c.l.b16 %v1471
  %v1616 = vunpack.c.l.b16 %v1472
  %v1617 = vunpack.c.l.b16 %v1473
  %v1618 = vunpack.c.l.b16 %v1474
  %v1619 = vunpack.c.l.b16 %v1475
  %v1620 = vunpack.c.l.b16 %v1476
  %v1621 = vunpack.c.l.b16 %v1477
  %v1622 = vunpack.c.l.b16 %v1478
  %v1623 = vunpack.c.l.b16 %v1479
  %v1624 = vunpack.c.l.b16 %v1480
  %v1625 = vunpack.c.l.b16 %v1481
  %v1626 = vunpack.c.l.b16 %v1482
  %v1627 = vunpack.c.l.b16 %v1483
  %v1628 = vunpack.c.l.b16 %v1484
  %v1629 = vunpack.c.l.b16 %v1485
  %v1630 = vunpack.c.l.b16 %v1486
  %v1631 = vunpack.c.l.b16 %v1487
  %v1632 = vunpack.c.l.b16 %v1488
  %v1633 = vunpack.c.l.b16 %v1489
  %v1634 = vunpack.c.l.b16 %v1490
  %v1635 = vunpack.c.l.b16 %v1491
  %v1636 = vunpack.c.l.b16 %v1492
  %v1637 = vunpack.c.l.b16 %v1493
  %v1638 = vunpack.c.l.b16 %v1494
  %v1639 = vunpack.c.l.b16 %v1495
  %v1640 = vunpack.c.l.b16 %v1496
  %v1641 = vunpack.c.l.b16 %v1497
  %v1642 = vunpack.c.l.b16 %v1498
  %v1643 = vunpack.c.l.b16 %v1499
  %v1644 = vunpack.c.l.b16 %v1500
  %v1645 = vunpack.c.l.b16 %v1501
  %v1646 = vunpack.c.l.b16 %v1502
  %v1647 = vunpack.c.l.b16 %v1503
  %v1648 = vunpack.c.l.b16 %v1504
  %v1649 = vunpack.c.l.b16 %v1505
  %v1650 = vunpack.c.l.b16 %v1506
  %v1651 = vunpack.c.l.b16 %v1507
  %v1652 = vunpack.c.l.b16 %v1508
  %v1653 = vunpack.c.l.b16 %v1509
  %v1654 = vunpack.c.l.b16 %v1510
  %v1655 = vunpack.c.l.b16 %v1511
  %v1656 = vunpack.c.l.b16 %v1512
  %v1657 = vunpack.c.l.b16 %v1513
  %v1658 = vunpack.c.l.b16 %v1514
  %v1659 = vunpack.c.l.b16 %v1515
  %v1660 = vunpack.c.l.b16 %v1516
  %v1661 = vunpack.c.l.b16 %v1517
  %v1662 = vunpack.c.l.b16 %v1518
  %v1663 = vunpack.c.l.b16 %v1519
  %v1664 = vunpack.c.l.b16 %v1520
  %v1665 = vunpack.c.l.b16 %v1521
  %v1666 = vunpack.c.l.b16 %v1522
  %v1667 = vunpack.c.l.b16 %v1523
  %v1668 = vunpack.c.l.b16 %v1524
  %v1669 = vunpack.c.l.b16 %v1525
  %v1670 = vunpack.c.l.b16 %v1526
  %v1671 = vpack.c.b16 %v1600, %v1599
  %v1672 = vpack.c.b16 %v1602, %v1601
  %v1673 = vpack.c.b16 %v1604, %v1603
  %v1674 = vpack.c.b16 %v1606, %v1605
  %v1675 = vpack.c.b16 %v1608, %v1607
  %v1676 = vpack.c.b16 %v1610, %v1609
  %v1677 = vpack.c.b16 %v1612, %v1611
  %v1678 = vpack.c.b16 %v1614, %v1613
  %v1679 = vpack.c.b16 %v1616, %v1615
  %v1680 = vpack.c.b16 %v1618, %v1617
  %v1681 = vpack.c.b16 %v1620, %v1619
  %v1682 = vpack.c.b16 %v1622, %v1621
  %v1683 = vpack.c.b16 %v1624, %v1623
  %v1684 = vpack.c.b16 %v1626, %v1625
  %v1685 = vpack.c.b16 %v1628, %v1627
  %v1686 = vpack.c.b16 %v1630, %v1629
  %v1687 = vpack.c.b16 %v1632, %v1631
  %v1688 = vpack.c.b16 %v1634, %v1633
  %v1689 = vpack.c.b16 %v1636, %v1635
  %v1690 = vpack.c.b16 %v1638, %v1637
  %v1691 = vpack.c.b16 %v1640, %v1639
  %v1692 = vpack.c.b16 %v1642, %v1641
  %v1693 = vpack.c.b16 %v1644, %v1643
  %v1694 = vpack.c.b16 %v1646, %v1645
  %v1695 = vpack.c.b16 %v1648, %v1647
  %v1696 = vpack.c.b16 %v1650, %v1649
  %v1697 = vpack.c.b16 %v1652, %v1651
  %v1698 = vpack.c.b16 %v1654, %v1653
  %v1699 = vpack.c.b16 %v1656, %v1655
  %v1700 = vpack.c.b16 %v1658, %v1657
  %v1701 = vpack.c.b16 %v1660, %v1659
  %v1702 = vpack.c.b16 %v1662, %v1661
  %v1703 = vpack.c.b16 %v1664, %v1663
  %v1704 = vpack.c.b16 %v1666, %v1665
  %v1705 = vpack.c.b16 %v1668, %v1667
  %v1706 = vpack.c.b16 %v1670, %v1669
  %v1744 = vsel %vm47, %v1419, 0
  %v1747 = vsel %vm47, %v1424, 0
  %v1750 = vsel %vm47, %v1429, 0
  %v1753 = vsel %vm47, %v1434, 0
  %v1756 = vsel %vm47, %v1439, 0
  %v1759 = vsel %vm47, %v1444, 0
  %v1762 = vsel %vm47, %v1449, 0
  %v1765 = vsel %vm47, %v1454, 0
  %1767 = vmatprep.subr.bf16.mxu0 0
  %1768 = vmatpush1.bf16.msra.mxu0 %v1671
  %1769 = vmatprep.subr.bf16.mxu0 0
  %1770 = vmatpush1.bf16.msra.mxu0 %v1672
  %1771 = vmatprep.subr.bf16.mxu0 0
  %1772 = vmatpush1.bf16.msra.mxu0 %v1673
  %1773 = vmatprep.subr.bf16.mxu0 0
  %1774 = vmatpush1.bf16.msra.mxu0 %v1674
  %1775 = vmatprep.subr.bf16.mxu0 0
  %1776 = vmatpush1.bf16.msra.mxu0 %v1675
  %1777 = vmatprep.subr.bf16.mxu0 0
  %1778 = vmatpush1.bf16.msra.mxu0 %v1676
  %1779 = vmatprep.subr.bf16.mxu0 0
  %1780 = vmatpush1.bf16.msra.mxu0 %v1677
  %1781 = vmatprep.subr.bf16.mxu0 0
  %1782 = vmatpush1.bf16.msra.mxu0 %v1678
  %1783 = vmatprep.subr.bf16.mxu0 0
  %1784 = vmatpush1.bf16.msra.mxu0 %v1679
  %1785 = vmatprep.subr.bf16.mxu0 0
  %1786 = vmatpush1.bf16.msra.mxu0 %v1680
  %1787 = vmatprep.subr.bf16.mxu0 0
  %1788 = vmatpush1.bf16.msra.mxu0 %v1681
  %1789 = vmatprep.subr.bf16.mxu0 0
  %1790 = vmatpush1.bf16.msra.mxu0 %v1682
  %1791 = vmatprep.subr.bf16.mxu0 0
  %1792 = vmatpush1.bf16.msra.mxu0 %v1683
  %1793 = vmatprep.subr.bf16.mxu0 0
  %1794 = vmatpush1.bf16.msra.mxu0 %v1684
  %1795 = vmatprep.subr.bf16.mxu0 0
  %1796 = vmatpush1.bf16.msra.mxu0 %v1685
  %1797 = vmatprep.subr.bf16.mxu0 0
  %1798 = vmatpush1.bf16.msra.mxu0 %v1686
  %1799 = vmatprep.mubr.bf16.mxu0 %v1416
  %1800 = vmatmul.mubr.bf16.gmra.mrb[0].mxu0 %v1415
  %v1801 = vpop.f32.mrb[0].mxu0
  %v1802 = vadd.f32 0.0, %v1801
  %v1803 = vpop.f32.mrb[0].mxu0
  %v1804 = vpop.f32.mrb[0].mxu0
  %v1805 = vadd.f32 0.0, %v1804
  %v1806 = vpop.f32.mrb[0].mxu0
  %1807 = vmatprep.mubr.bf16.mxu0 %v1421
  %1808 = vmatmul.mubr.bf16.gmra.mrb[0].mxu0 %v1420
  %v1809 = vpop.f32.mrb[0].mxu0
  %v1810 = vadd.f32 0.0, %v1809
  %v1811 = vpop.f32.mrb[0].mxu0
  %v1812 = vpop.f32.mrb[0].mxu0
  %v1813 = vadd.f32 0.0, %v1812
  %v1814 = vpop.f32.mrb[0].mxu0
  %1815 = vmatprep.mubr.bf16.mxu0 %v1426
  %1816 = vmatmul.mubr.bf16.gmra.mrb[0].mxu0 %v1425
  %v1817 = vpop.f32.mrb[0].mxu0
  %v1818 = vadd.f32 0.0, %v1817
  %v1819 = vpop.f32.mrb[0].mxu0
  %v1820 = vpop.f32.mrb[0].mxu0
  %v1821 = vadd.f32 0.0, %v1820
  %v1822 = vpop.f32.mrb[0].mxu0
  %1823 = vmatprep.mubr.bf16.mxu0 %v1431
  %1824 = vmatmul.mubr.bf16.gmra.mrb[0].mxu0 %v1430
  %v1825 = vpop.f32.mrb[0].mxu0
  %v1826 = vadd.f32 0.0, %v1825
  %v1827 = vpop.f32.mrb[0].mxu0
  %v1828 = vpop.f32.mrb[0].mxu0
  %v1829 = vadd.f32 0.0, %v1828
  %v1830 = vpop.f32.mrb[0].mxu0
  %1831 = vmatprep.mubr.bf16.mxu0 %v1436
  %1832 = vmatmul.mubr.bf16.gmra.mrb[0].mxu0 %v1435
  %v1833 = vpop.f32.mrb[0].mxu0
  %v1834 = vadd.f32 0.0, %v1833
  %v1835 = vpop.f32.mrb[0].mxu0
  %v1836 = vpop.f32.mrb[0].mxu0
  %v1837 = vadd.f32 0.0, %v1836
  %v1838 = vpop.f32.mrb[0].mxu0
  %1839 = vmatprep.mubr.bf16.mxu0 %v1441
  %1840 = vmatmul.mubr.bf16.gmra.mrb[0].mxu0 %v1440
  %v1841 = vpop.f32.mrb[0].mxu0
  %v1842 = vadd.f32 0.0, %v1841
  %v1843 = vpop.f32.mrb[0].mxu0
  %v1844 = vpop.f32.mrb[0].mxu0
  %v1845 = vadd.f32 0.0, %v1844
  %v1846 = vpop.f32.mrb[0].mxu0
  %1847 = vmatprep.mubr.bf16.mxu0 %v1446
  %1848 = vmatmul.mubr.bf16.gmra.mrb[0].mxu0 %v1445
  %v1849 = vpop.f32.mrb[0].mxu0
  %v1850 = vadd.f32 0.0, %v1849
  %v1851 = vpop.f32.mrb[0].mxu0
  %v1852 = vpop.f32.mrb[0].mxu0
  %v1853 = vadd.f32 0.0, %v1852
  %v1854 = vpop.f32.mrb[0].mxu0
  %1855 = vmatprep.mubr.bf16.mxu0 %v1451
  %1856 = vmatmul.mubr.bf16.gmra.mrb[0].mxu0 %v1450
  %v1857 = vpop.f32.mrb[0].mxu0
  %v1858 = vadd.f32 0.0, %v1857
  %v1859 = vpop.f32.mrb[0].mxu0
  %v1860 = vpop.f32.mrb[0].mxu0
  %v1861 = vadd.f32 0.0, %v1860
  %v1862 = vpop.f32.mrb[0].mxu0
  %1863 = vdwg.mxu0
  %1864 = vmatprep.subr.bf16.mxu0 0
  %1865 = vmatpush1.bf16.msra.mxu0 %v1687
  %1866 = vmatprep.subr.bf16.mxu0 0
  %1867 = vmatpush1.bf16.msra.mxu0 %v1688
  %1868 = vmatprep.subr.bf16.mxu0 0
  %1869 = vmatpush1.bf16.msra.mxu0 %v1689
  %1870 = vmatprep.subr.bf16.mxu0 0
  %1871 = vmatpush1.bf16.msra.mxu0 %v1690
  %1872 = vmatprep.subr.bf16.mxu0 0
  %1873 = vmatpush1.bf16.msra.mxu0 %v1691
  %1874 = vmatprep.subr.bf16.mxu0 0
  %1875 = vmatpush1.bf16.msra.mxu0 %v1692
  %1876 = vmatprep.subr.bf16.mxu0 0
  %1877 = vmatpush1.bf16.msra.mxu0 %v1693
  %1878 = vmatprep.subr.bf16.mxu0 0
  %1879 = vmatpush1.bf16.msra.mxu0 %v1694
  %1880 = vmatprep.subr.bf16.mxu0 0
  %1881 = vmatpush1.bf16.msra.mxu0 %v1695
  %1882 = vmatprep.subr.bf16.mxu0 0
  %1883 = vmatpush1.bf16.msra.mxu0 %v1696
  %1884 = vmatprep.subr.bf16.mxu0 0
  %1885 = vmatpush1.bf16.msra.mxu0 %v1697
  %1886 = vmatprep.subr.bf16.mxu0 0
  %1887 = vmatpush1.bf16.msra.mxu0 %v1698
  %1888 = vmatprep.subr.bf16.mxu0 0
  %1889 = vmatpush1.bf16.msra.mxu0 %v1699
  %1890 = vmatprep.subr.bf16.mxu0 0
  %1891 = vmatpush1.bf16.msra.mxu0 %v1700
  %1892 = vmatprep.subr.bf16.mxu0 0
  %1893 = vmatpush1.bf16.msra.mxu0 %v1701
  %1894 = vmatprep.subr.bf16.mxu0 0
  %1895 = vmatpush1.bf16.msra.mxu0 %v1702
  %1896 = vmatprep.mubr.bf16.mxu0 %v1418
  %1897 = vmatmul.mubr.bf16.gmra.mrb[0].mxu0 %v1417
  %v1898 = vpop.f32.mrb[0].mxu0
  %v1899 = vadd.f32 %v1802, %v1898
  %v1900 = vpop.f32.mrb[0].mxu0
  %v1901 = vpop.f32.mrb[0].mxu0
  %v1902 = vadd.f32 %v1805, %v1901
  %v1903 = vpop.f32.mrb[0].mxu0
  %1904 = vmatprep.mubr.bf16.mxu0 %v1423
  %1905 = vmatmul.mubr.bf16.gmra.mrb[0].mxu0 %v1422
  %v1906 = vpop.f32.mrb[0].mxu0
  %v1907 = vadd.f32 %v1810, %v1906
  %v1908 = vpop.f32.mrb[0].mxu0
  %v1909 = vpop.f32.mrb[0].mxu0
  %v1910 = vadd.f32 %v1813, %v1909
  %v1911 = vpop.f32.mrb[0].mxu0
  %1912 = vmatprep.mubr.bf16.mxu0 %v1428
  %1913 = vmatmul.mubr.bf16.gmra.mrb[0].mxu0 %v1427
  %v1914 = vpop.f32.mrb[0].mxu0
  %v1915 = vadd.f32 %v1818, %v1914
  %v1916 = vpop.f32.mrb[0].mxu0
  %v1917 = vpop.f32.mrb[0].mxu0
  %v1918 = vadd.f32 %v1821, %v1917
  %v1919 = vpop.f32.mrb[0].mxu0
  %1920 = vmatprep.mubr.bf16.mxu0 %v1433
  %1921 = vmatmul.mubr.bf16.gmra.mrb[0].mxu0 %v1432
  %v1922 = vpop.f32.mrb[0].mxu0
  %v1923 = vadd.f32 %v1826, %v1922
  %v1924 = vpop.f32.mrb[0].mxu0
  %v1925 = vpop.f32.mrb[0].mxu0
  %v1926 = vadd.f32 %v1829, %v1925
  %v1927 = vpop.f32.mrb[0].mxu0
  %1928 = vmatprep.mubr.bf16.mxu0 %v1438
  %1929 = vmatmul.mubr.bf16.gmra.mrb[0].mxu0 %v1437
  %v1930 = vpop.f32.mrb[0].mxu0
  %v1931 = vadd.f32 %v1834, %v1930
  %v1932 = vpop.f32.mrb[0].mxu0
  %v1933 = vpop.f32.mrb[0].mxu0
  %v1934 = vadd.f32 %v1837, %v1933
  %v1935 = vpop.f32.mrb[0].mxu0
  %1936 = vmatprep.mubr.bf16.mxu0 %v1443
  %1937 = vmatmul.mubr.bf16.gmra.mrb[0].mxu0 %v1442
  %v1938 = vpop.f32.mrb[0].mxu0
  %v1939 = vadd.f32 %v1842, %v1938
  %v1940 = vpop.f32.mrb[0].mxu0
  %v1941 = vpop.f32.mrb[0].mxu0
  %v1942 = vadd.f32 %v1845, %v1941
  %v1943 = vpop.f32.mrb[0].mxu0
  %1944 = vmatprep.mubr.bf16.mxu0 %v1448
  %1945 = vmatmul.mubr.bf16.gmra.mrb[0].mxu0 %v1447
  %v1946 = vpop.f32.mrb[0].mxu0
  %v1947 = vadd.f32 %v1850, %v1946
  %v1948 = vpop.f32.mrb[0].mxu0
  %v1949 = vpop.f32.mrb[0].mxu0
  %v1950 = vadd.f32 %v1853, %v1949
  %v1951 = vpop.f32.mrb[0].mxu0
  %1952 = vmatprep.mubr.bf16.mxu0 %v1453
  %1953 = vmatmul.mubr.bf16.gmra.mrb[0].mxu0 %v1452
  %v1954 = vpop.f32.mrb[0].mxu0
  %v1955 = vadd.f32 %v1858, %v1954
  %v1956 = vpop.f32.mrb[0].mxu0
  %v1957 = vpop.f32.mrb[0].mxu0
  %v1958 = vadd.f32 %v1861, %v1957
  %v1959 = vpop.f32.mrb[0].mxu0
  %1960 = vdwg.mxu0
  %1961 = vmatprep.subr.bf16.mxu0 0
  %1962 = vmatpush1.bf16.msra.mxu0 %v1703
  %1963 = vmatprep.subr.bf16.mxu0 0
  %1964 = vmatpush1.bf16.msra.mxu0 %v1704
  %1965 = vmatprep.subr.bf16.mxu0 0
  %1966 = vmatpush1.bf16.msra.mxu0 %v1705
  %1967 = vmatprep.subr.bf16.mxu0 0
  %1968 = vmatpush1.bf16.msra.mxu0 %v1706
  %1969 = vmatprep.subr.bf16.mxu0 0
  %1970 = vmatpush1.bf16.msra.mxu0 0
  %1971 = vmatprep.subr.bf16.mxu0 0
  %1972 = vmatpush1.bf16.msra.mxu0 0
  %1973 = vmatprep.subr.bf16.mxu0 0
  %1974 = vmatpush1.bf16.msra.mxu0 0
  %1975 = vmatprep.subr.bf16.mxu0 0
  %1976 = vmatpush1.bf16.msra.mxu0 0
  %1977 = vmatprep.subr.bf16.mxu0 0
  %1978 = vmatpush1.bf16.msra.mxu0 0
  %1979 = vmatprep.subr.bf16.mxu0 0
  %1980 = vmatpush1.bf16.msra.mxu0 0
  %1981 = vmatprep.subr.bf16.mxu0 0
  %1982 = vmatpush1.bf16.msra.mxu0 0
  %1983 = vmatprep.subr.bf16.mxu0 0
  %1984 = vmatpush1.bf16.msra.mxu0 0
  %1985 = vmatprep.subr.bf16.mxu0 0
  %1986 = vmatpush1.bf16.msra.mxu0 0
  %1987 = vmatprep.subr.bf16.mxu0 0
  %1988 = vmatpush1.bf16.msra.mxu0 0
  %1989 = vmatprep.subr.bf16.mxu0 0
  %1990 = vmatpush1.bf16.msra.mxu0 0
  %1991 = vmatprep.subr.bf16.mxu0 0
  %1992 = vmatpush1.bf16.msra.mxu0 0
  %1993 = vmatprep.mubr.bf16.mxu0 0
  %1994 = vmatmul.mubr.bf16.gmra.mrb[0].mxu0 %v1744
  %v1995 = vpop.f32.mrb[0].mxu0
  %v1996 = vadd.f32 %v1899, %v1995
  %v1997 = vpop.f32.mrb[0].mxu0
  %v1998 = vpop.f32.mrb[0].mxu0
  %v1999 = vadd.f32 %v1902, %v1998
  %v2000 = vpop.f32.mrb[0].mxu0
  %2001 = vmatprep.mubr.bf16.mxu0 0
  %2002 = vmatmul.mubr.bf16.gmra.mrb[0].mxu0 %v1747
  %v2003 = vpop.f32.mrb[0].mxu0
  %v2004 = vadd.f32 %v1907, %v2003
  %v2005 = vpop.f32.mrb[0].mxu0
  %v2006 = vpop.f32.mrb[0].mxu0
  %v2007 = vadd.f32 %v1910, %v2006
  %v2008 = vpop.f32.mrb[0].mxu0
  %2009 = vmatprep.mubr.bf16.mxu0 0
  %2010 = vmatmul.mubr.bf16.gmra.mrb[0].mxu0 %v1750
  %v2011 = vpop.f32.mrb[0].mxu0
  %v2012 = vadd.f32 %v1915, %v2011
  %v2013 = vpop.f32.mrb[0].mxu0
  %v2014 = vpop.f32.mrb[0].mxu0
  %v2015 = vadd.f32 %v1918, %v2014
  %v2016 = vpop.f32.mrb[0].mxu0
  %2017 = vmatprep.mubr.bf16.mxu0 0
  %2018 = vmatmul.mubr.bf16.gmra.mrb[0].mxu0 %v1753
  %v2019 = vpop.f32.mrb[0].mxu0
  %v2020 = vadd.f32 %v1923, %v2019
  %v2021 = vpop.f32.mrb[0].mxu0
  %v2022 = vpop.f32.mrb[0].mxu0
  %v2023 = vadd.f32 %v1926, %v2022
  %v2024 = vpop.f32.mrb[0].mxu0
  %2025 = vmatprep.mubr.bf16.mxu0 0
  %2026 = vmatmul.mubr.bf16.gmra.mrb[0].mxu0 %v1756
  %v2027 = vpop.f32.mrb[0].mxu0
  %v2028 = vadd.f32 %v1931, %v2027
  %v2029 = vpop.f32.mrb[0].mxu0
  %v2030 = vpop.f32.mrb[0].mxu0
  %v2031 = vadd.f32 %v1934, %v2030
  %v2032 = vpop.f32.mrb[0].mxu0
  %2033 = vmatprep.mubr.bf16.mxu0 0
  %2034 = vmatmul.mubr.bf16.gmra.mrb[0].mxu0 %v1759
  %v2035 = vpop.f32.mrb[0].mxu0
  %v2036 = vadd.f32 %v1939, %v2035
  %v2037 = vpop.f32.mrb[0].mxu0
  %v2038 = vpop.f32.mrb[0].mxu0
  %v2039 = vadd.f32 %v1942, %v2038
  %v2040 = vpop.f32.mrb[0].mxu0
  %2041 = vmatprep.mubr.bf16.mxu0 0
  %2042 = vmatmul.mubr.bf16.gmra.mrb[0].mxu0 %v1762
  %v2043 = vpop.f32.mrb[0].mxu0
  %v2044 = vadd.f32 %v1947, %v2043
  %v2045 = vpop.f32.mrb[0].mxu0
  %v2046 = vpop.f32.mrb[0].mxu0
  %v2047 = vadd.f32 %v1950, %v2046
  %v2048 = vpop.f32.mrb[0].mxu0
  %2049 = vmatprep.mubr.bf16.mxu0 0
  %2050 = vmatmul.mubr.bf16.gmra.mrb[0].mxu0 %v1765
  %v2051 = vpop.f32.mrb[0].mxu0
  %v2052 = vadd.f32 %v1955, %v2051
  %v2053 = vpop.f32.mrb[0].mxu0
  %v2054 = vpop.f32.mrb[0].mxu0
  %v2055 = vadd.f32 %v1958, %v2054
  %v2056 = vpop.f32.mrb[0].mxu0
  %2057 = vdwg.mxu0
  %v2058 = vpack.c.bf16 %v1999, %v1996
  %v2059 = vpack.c.bf16 %v2007, %v2004
  %v2060 = vpack.c.bf16 %v2015, %v2012
  %v2061 = vpack.c.bf16 %v2023, %v2020
  %v2062 = vpack.c.bf16 %v2031, %v2028
  %v2063 = vpack.c.bf16 %v2039, %v2036
  %v2064 = vpack.c.bf16 %v2047, %v2044
  %v2065 = vpack.c.bf16 %v2055, %v2052
  %v2074 = vunpack.c.l.b16 %v2058
  %v2075 = vunpack.c.h.b16 %v2058
  %v2076 = vunpack.c.l.b16 %v2059
  %v2077 = vunpack.c.h.b16 %v2059
  %v2078 = vunpack.c.l.b16 %v2060
  %v2079 = vunpack.c.h.b16 %v2060
  %v2080 = vunpack.c.l.b16 %v2061
  %v2081 = vunpack.c.h.b16 %v2061
  %v2082 = vunpack.c.l.b16 %v2062
  %v2083 = vunpack.c.h.b16 %v2062
  %v2084 = vunpack.c.l.b16 %v2063
  %v2085 = vunpack.c.h.b16 %v2063
  %v2086 = vunpack.c.l.b16 %v2064
  %v2087 = vunpack.c.h.b16 %v2064
  %v2088 = vunpack.c.l.b16 %v2065
  %v2089 = vunpack.c.h.b16 %v2065
  %v2090 = vpack.c.b16 %v2074, %v2074
  %v2091 = vpack.c.b16 %v2075, %v2075
  %v2092 = vpack.c.b16 %v2076, %v2076
  %v2093 = vpack.c.b16 %v2077, %v2077
  %v2094 = vpack.c.b16 %v2078, %v2078
  %v2095 = vpack.c.b16 %v2079, %v2079
  %v2096 = vpack.c.b16 %v2080, %v2080
  %v2097 = vpack.c.b16 %v2081, %v2081
  %v2098 = vpack.c.b16 %v2082, %v2082
  %v2099 = vpack.c.b16 %v2083, %v2083
  %v2100 = vpack.c.b16 %v2084, %v2084
  %v2101 = vpack.c.b16 %v2085, %v2085
  %v2102 = vpack.c.b16 %v2086, %v2086
  %v2103 = vpack.c.b16 %v2087, %v2087
  %v2104 = vpack.c.b16 %v2088, %v2088
  %v2105 = vpack.c.b16 %v2089, %v2089
  %2122 = vst [vmem:[%s2] sm:$0xf] %v2090
  %2123 = vst [vmem:[%s2 + $0x4] sm:$0xf] %v2091
  %2124 = vst [vmem:[%s2 + $0x8] sm:$0xf] %v2092
  %2125 = vst [vmem:[%s2 + $0xc] sm:$0xf] %v2093
  %2126 = vst [vmem:[%s2 + $0x10] sm:$0xf] %v2094
  %2127 = vst [vmem:[%s2 + $0x14] sm:$0xf] %v2095
  %2128 = vst [vmem:[%s2 + $0x18] sm:$0xf] %v2096
  %2129 = vst [vmem:[%s2 + $0x1c] sm:$0xf] %v2097
  %2130 = vst [vmem:[%s2 + $0x20] sm:$0xf] %v2098
  %2131 = vst [vmem:[%s2 + $0x24] sm:$0xf] %v2099
  %2132 = vst [vmem:[%s2 + $0x28] sm:$0xf] %v2100
  %2133 = vst [vmem:[%s2 + $0x2c] sm:$0xf] %v2101
  %2134 = vst [vmem:[%s2 + $0x30] sm:$0xf] %v2102
  %2135 = vst [vmem:[%s2 + $0x34] sm:$0xf] %v2103
  %2136 = vst [vmem:[%s2 + $0x38] sm:$0xf] %v2104
  %2137 = vst [vmem:[%s2 + $0x3c] sm:$0xf] %v2105
  %v2138 = vadd.f32 %v1996, %v1999
  %v2139 = vadd.f32 %v2138, %v2004
  %v2140 = vadd.f32 %v2139, %v2007
  %v2141 = vadd.f32 %v2140, %v2012
  %v2142 = vadd.f32 %v2141, %v2015
  %v2143 = vadd.f32 %v2142, %v2020
  %v2144 = vadd.f32 %v2143, %v2023
  %v2145 = vadd.f32 %v2144, %v2028
  %v2146 = vadd.f32 %v2145, %v2031
  %v2147 = vadd.f32 %v2146, %v2036
  %v2148 = vadd.f32 %v2147, %v2039
  %v2149 = vadd.f32 %v2148, %v2044
  %v2150 = vadd.f32 %v2149, %v2047
  %v2151 = vadd.f32 %v2150, %v2052
  %v2152 = vadd.f32 %v2151, %v2055
  %v2153 = vrot.slane %v2152, 4
  %v2154 = vadd.f32 %v2152, %v2153
  %v2155 = vrot.slane %v2154, 2
  %v2156 = vadd.f32 %v2154, %v2155
  %v2157 = vrot.slane %v2156, 1
  %v2158 = vadd.f32 %v2156, %v2157
  %2159 = vst [vmem:[%s3] sm:$0x1] %v2158
  %v2160 = vmul.f32 %v1996, %v1996
  %v2161 = vmul.f32 %v1999, %v1999
  %v2162 = vmul.f32 %v2004, %v2004
  %v2163 = vmul.f32 %v2007, %v2007
  %v2164 = vmul.f32 %v2012, %v2012
  %v2165 = vmul.f32 %v2015, %v2015
  %v2166 = vmul.f32 %v2020, %v2020
  %v2167 = vmul.f32 %v2023, %v2023
  %v2168 = vmul.f32 %v2028, %v2028
  %v2169 = vmul.f32 %v2031, %v2031
  %v2170 = vmul.f32 %v2036, %v2036
  %v2171 = vmul.f32 %v2039, %v2039
  %v2172 = vmul.f32 %v2044, %v2044
  %v2173 = vmul.f32 %v2047, %v2047
  %v2174 = vmul.f32 %v2052, %v2052
  %v2175 = vmul.f32 %v2055, %v2055
  %v2176 = vadd.f32 %v2160, %v2161
  %v2177 = vadd.f32 %v2176, %v2162
  %v2178 = vadd.f32 %v2177, %v2163
  %v2179 = vadd.f32 %v2178, %v2164
  %v2180 = vadd.f32 %v2179, %v2165
  %v2181 = vadd.f32 %v2180, %v2166
  %v2182 = vadd.f32 %v2181, %v2167
  %v2183 = vadd.f32 %v2182, %v2168
  %v2184 = vadd.f32 %v2183, %v2169
  %v2185 = vadd.f32 %v2184, %v2170
  %v2186 = vadd.f32 %v2185, %v2171
  %v2187 = vadd.f32 %v2186, %v2172
  %v2188 = vadd.f32 %v2187, %v2173
  %v2189 = vadd.f32 %v2188, %v2174
  %v2190 = vadd.f32 %v2189, %v2175
  %v2191 = vrot.slane %v2190, 4
  %v2192 = vadd.f32 %v2190, %v2191
  %v2193 = vrot.slane %v2192, 2
  %v2194 = vadd.f32 %v2192, %v2193
  %v2195 = vrot.slane %v2194, 1
  %v2196 = vadd.f32 %v2194, %v2195
  %2197 = vst [vmem:[%s4] sm:$0x1] %v2196
  // Predicated region
  $region10: #{patch_merging.2} parent=0 // pred_check
    _
  $region11: #{patch_merging.2} parent=0 // pred_check_branch
    %2199 = sbr.rel (0) target = $region13
  $region12: #{patch_merging.2} parent=0 // pred_region
    _
  $region13: #{patch_merging.2} parent=0 // pred_fallthru
    _
  // Predicated region
  $region14: #{patch_merging.2} parent=0 // pred_check
    _
  $region15: #{patch_merging.2} parent=0 // pred_check_branch
    %2201 = sbr.rel (0) target = $region17
  $region16: #{patch_merging.2} parent=0 // pred_region
    _
  $region17: #{patch_merging.2} parent=0 // pred_fallthru
    _
  // Predicated region
  $region18: #{patch_merging.2} parent=0 // pred_check
    _
  $region19: #{patch_merging.2} parent=0 // pred_check_branch
    %2203 = sbr.rel (0) target = $region21
  $region20: #{patch_merging.2} parent=0 // pred_region
    _
  $region21: #{patch_merging.2} parent=0 // pred_fallthru
    _
  // Predicated region
  $region22: #{patch_merging.2} parent=0 // pred_check
    _
  $region23: #{patch_merging.2} parent=0 // pred_check_branch
    %2205 = sbr.rel (0) target = $region25
  $region24: #{patch_merging.2} parent=0 // pred_region
    _
  $region25: #{patch_merging.2} parent=0 // pred_fallthru
    _
  // Predicated region
  $region26: #{patch_merging.2} parent=0 // pred_check
    _
  $region27: #{patch_merging.2} parent=0 // pred_check_branch
    %2207 = sbr.rel (0) target = $region29
  $region28: #{patch_merging.2} parent=0 // pred_region
    _
  $region29: #{patch_merging.2} parent=0 // pred_fallthru
    _
  // Predicated region
  $region30: #{patch_merging.2} parent=0 // pred_check
    _
  $region31: #{patch_merging.2} parent=0 // pred_check_branch
    %2209 = sbr.rel (0) target = $region33
  $region32: #{patch_merging.2} parent=0 // pred_region
    _
  $region33: #{patch_merging.2} parent=0 // pred_fallthru
    _

</llo_original>
